<compile_context>
chip_gen: v7x
topology: tpu7x:2x2x1
jax: 0.10.0
libtpu: 0.0.40
codegen_flags: <defaults>
</compile_context>

<pallas_src>
import functools

import jax
import jax.numpy as jnp
from jax.experimental import pallas as pl
from jax.experimental.pallas import tpu as pltpu


# -----------------------------------------------------------------------------
# Fused Pallas kernel: conv (banded matmuls) + batch stats + BatchNorm + ReLU
# -----------------------------------------------------------------------------
def _conv_bn_relu_kernel(x_ref, wmat_ref, fold_ref, gamma_ref, beta_ref,   # in
                         o_ref,                                            # out
                         ypre_ref, sum_ref, sumsq_ref,                     # scratch
                         *, H, WCout, inv_count, eps):
    """Grid over batch blocks ("arbitrary").

    Per step b (Nb images):
      * conv as KH accumulated lane-dense matmuls, M = Nb*H, K = W*Cin,
        N = W*Cout, bf16 inputs / f32 accumulation,
      * results stashed in the VMEM-resident `ypre_ref` scratch (never to HBM),
      * per-lane sum / sum-of-squares accumulated in VMEM scratch.
    Last step only:
      * per-channel batch mean/var obtained from the per-lane sums via a 0/1
        fold matmul (stays in the (1, W*Cout) lane layout),
      * fused scale/shift + ReLU applied to the whole resident ypre,
      * single lane-dense bf16 store of the (N, H, W*Cout) output block.
    """
    b = pl.program_id(0)
    nb = x_ref.shape[0]                                   # images per grid step
    KH = wmat_ref.shape[0]
    K = wmat_ref.shape[1]                                 # W*Cin

    # ---- convolution ---------------------------------------------------------
    x = x_ref[...]                                        # (Nb, Hp, W*Cin) bf16
    acc = jnp.zeros((nb * H, WCout), jnp.float32)
    for kh in range(KH):                                  # static, unrolled
        lhs = x[:, kh:kh + H, :].reshape(nb * H, K)
        acc = acc + jnp.dot(lhs, wmat_ref[kh],
                            preferred_element_type=jnp.float32)

    # Stash pre-BN activations in the resident VMEM scratch (never hits HBM).
    ypre_ref[pl.ds(b * nb, nb)] = acc.reshape(nb, H, WCout)

    # ---- batch statistics (per-lane, lane = w*Cout + c) ----------------------
    s1 = jnp.sum(acc, axis=0, keepdims=True)              # (1, W*Cout)
    s2 = jnp.sum(acc * acc, axis=0, keepdims=True)

    @pl.when(b == 0)
    def _():
        sum_ref[...] = s1
        sumsq_ref[...] = s2

    @pl.when(b > 0)
    def _():
        sum_ref[...] += s1
        sumsq_ref[...] += s2

    # ---- epilogue: BN fold + scale/shift + ReLU on resident activations ------
    @pl.when(b == pl.num_programs(0) - 1)
    def _():
        # Per-channel sums, broadcast back across the W lane slots, via a 0/1
        # fold matmul (avoids an in-kernel lane->(sublane,lane) reshape).
        ch_sum = jnp.dot(sum_ref[...], fold_ref[...],
                         preferred_element_type=jnp.float32)    # (1, W*Cout)
        ch_sumsq = jnp.dot(sumsq_ref[...], fold_ref[...],
                           preferred_element_type=jnp.float32)
        mean = ch_sum * inv_count
        # TODO(synk): E[x^2]-E[x]^2 in f32 can cancel for very large N*H*W;
        #             switch to a two-level (per-block mean) scheme at scale.
        var = ch_sumsq * inv_count - mean * mean           # biased batch variance
        inv_std = jax.lax.rsqrt(var + eps)
        scale = gamma_ref[...] * inv_std                   # (1, W*Cout)
        shift = beta_ref[...] - mean * scale
        y = ypre_ref[...] * scale[None] + shift[None]      # (N, H, W*Cout) f32
        o_ref[...] = jnp.maximum(y, 0.0).astype(o_ref.dtype)


# -----------------------------------------------------------------------------
# Host-side helpers / wrappers
# -----------------------------------------------------------------------------
def _lower_conv_weights(w_hwio, width, pad):
    """(KH, KW, Cin, Cout) -> (KH, W*Cin, W*Cout) banded weight matrix (bf16).

    wmat[kh, wi*Cin+ci, wo*Cout+co] = w[kh, wi-wo+pad, ci, co] for 0<=wi-wo+pad<KW.
    The "same" W-padding is absorbed into the clipped band, so activations are
    never padded along W and the conv output lands directly in (H, W*Cout) lanes.
    """
    KH, KW, Cin, Cout = w_hwio.shape
    wi = jnp.arange(width)[:, None]
    wo = jnp.arange(width)[None, :]
    kw = wi - wo + pad                                      # (W, W)
    valid = (kw >= 0) & (kw < KW)
    gathered = w_hwio[:, jnp.clip(kw, 0, KW - 1)]           # (KH, W, W, Cin, Cout)
    banded = jnp.where(valid[None, :, :, None, None], gathered, 0.0)
    wmat = banded.transpose(0, 1, 3, 2, 4).reshape(KH, width * Cin, width * Cout)
    return wmat.astype(jnp.bfloat16)


def _channel_fold_matrix(width, cout):
    """(W*Cout, W*Cout) 0/1 matrix: fold per-lane sums into per-channel sums,
    broadcast back to every W slot, all within the lane layout."""
    i = jnp.arange(width * cout)
    return (i[:, None] % cout == i[None, :] % cout).astype(jnp.float32)


def _pick_batch_tile(n, h, target_rows=256):
    """Largest divisor of n with nb*h >= target_rows when possible (MXU M-fill)."""
    nb = min(n, max(1, -(-target_rows // h)))
    while n % nb:
        nb -= 1
    return nb


def _vmem_limit_bytes(nb, n, hp, h, wcin, wcout, kh):
    need = (2 * nb * hp * wcin * 2          # double-buffered bf16 input blocks
            + kh * wcin * wcout * 2         # lowered weights (bf16, resident)
            + wcout * wcout * 4             # channel-fold matrix (f32, resident)
            + 4 * wcout * 4                 # gamma/beta/sum/sumsq lane vectors
            + n * h * wcout * 2             # resident bf16 output block
            + n * h * wcout * 4)            # resident f32 pre-BN scratch
    # Generous headroom, but stay well inside v7x's 64 MiB physical VMEM.
    return int(min(48 * 2 ** 20, max(16 * 2 ** 20, 4 * need)))


def conv_bn_relu_layer(x_hpad, wmat, fold, gamma_l, beta_l, *, H, W, Cout, eps):
    """One fused ConvBlock layer on an H-padded (N, Hp, W*Cin) bf16 input."""
    N, Hp, WCin = x_hpad.shape
    KH = wmat.shape[0]
    WCout = W * Cout
    nb = _pick_batch_tile(N, H)
    nblocks = N // nb
    count = N * H * W

    kernel = functools.partial(_conv_bn_relu_kernel,
                               H=H, WCout=WCout,
                               inv_count=1.0 / count, eps=eps)

    return pl.pallas_call(
        kernel,
        grid=(nblocks,),
        out_shape=jax.ShapeDtypeStruct((N, H, WCout), jnp.bfloat16),
        in_specs=[
            pl.BlockSpec((nb, Hp, WCin), lambda b: (b, 0, 0)),       # activations
            pl.BlockSpec((KH, WCin, WCout), lambda b: (0, 0, 0)),    # banded weights
            pl.BlockSpec((WCout, WCout), lambda b: (0, 0)),          # channel fold
            pl.BlockSpec((1, WCout), lambda b: (0, 0)),              # gamma (lane-tiled)
            pl.BlockSpec((1, WCout), lambda b: (0, 0)),              # beta  (lane-tiled)
        ],
        # Output block is revisited (same index every step) -> VMEM-resident,
        # written once by the last-step epilogue, single HBM writeback.
        out_specs=pl.BlockSpec((N, H, WCout), lambda b: (0, 0, 0)),
        scratch_shapes=[
            pltpu.VMEM((N, H, WCout), jnp.float32),   # resident pre-BN activations
            pltpu.VMEM((1, WCout), jnp.float32),      # per-lane sum
            pltpu.VMEM((1, WCout), jnp.float32),      # per-lane sum of squares
        ],
        compiler_params=pltpu.CompilerParams(
            dimension_semantics=("arbitrary",),       # accumulators + resident output
            vmem_limit_bytes=_vmem_limit_bytes(nb, N, Hp, H, WCin, WCout, KH)),
    )(x_hpad, wmat, fold, gamma_l, beta_l)


def conv_block_forward(x_nchw, params, kernel_size, eps=1e-5):
    """ConvBlock forward: (Conv2d -> BatchNorm2d(batch stats) -> ReLU) x layers."""
    pad = (kernel_size - 1) // 2
    N, C0, H, W = x_nchw.shape
    # NHWC, bf16 (halves DMA, makes the kernel's bf16 path a no-op cast), lanes = w*C + c.
    y = jnp.transpose(x_nchw, (0, 2, 3, 1)).astype(jnp.bfloat16).reshape(N, H, W * C0)
    Cout = C0
    for (w_hwio, _bias, gamma, beta) in params:
        # _bias is deliberately unused: a per-channel constant bias is exactly
        # cancelled by the batch-statistic mean subtraction in training-mode BN.
        _, _, Cin, Cout = w_hwio.shape
        # "same" H padding only (W padding is folded into the banded weights).
        x_hpad = jnp.pad(y, ((0, 0), (pad, pad), (0, 0)))
        wmat = _lower_conv_weights(w_hwio, W, pad)
        fold = _channel_fold_matrix(W, Cout)
        gamma_l = jnp.tile(gamma, W).reshape(1, W * Cout)
        beta_l = jnp.tile(beta, W).reshape(1, W * Cout)
        y = conv_bn_relu_layer(x_hpad, wmat, fold, gamma_l, beta_l,
                               H=H, W=W, Cout=Cout, eps=eps)   # (N, H, W*Cout) bf16
    out = y.reshape(N, H, W, Cout)
    return jnp.transpose(out, (0, 3, 1, 2)).astype(jnp.float32)   # NCHW f32


def init_conv_block_params(key, in_channels, out_channels, kernel_size,
                           repeat_count):
    """Deterministic synthetic init (PyTorch-like uniform bounds)."""
    params = []
    cin = in_channels
    for _ in range(repeat_count):
        key, kw_key, kb_key = jax.random.split(key, 3)
        fan_in = cin * kernel_size * kernel_size
        bound = 1.0 / jnp.sqrt(jnp.float32(fan_in))
        w = jax.random.uniform(kw_key,
                               (kernel_size, kernel_size, cin, out_channels),
                               jnp.float32, -bound, bound)
        b = jax.random.uniform(kb_key, (out_channels,), jnp.float32,
                               -bound, bound)
        gamma = jnp.ones((out_channels,), jnp.float32)      # BN weight init
        beta = jnp.zeros((out_channels,), jnp.float32)      # BN bias init
        params.append((w, b, gamma, beta))
        cin = out_channels
    return params


if __name__ == "__main__":
    # ConvBlock(in_channels=4, out_channels=8, kernel_size=3,
    #           same_size=True, repeat_count=2)
    in_channels, out_channels, kernel_size, repeat_count = 4, 8, 3, 2
    batch, spatial = 2, 16

    key = jax.random.PRNGKey(0)
    key, xk = jax.random.split(key)
    x_nchw = jax.random.normal(xk, (batch, in_channels, spatial, spatial),
                               jnp.float32)
    params = init_conv_block_params(key, in_channels, out_channels,
                                    kernel_size, repeat_count)

    fwd = jax.jit(lambda x, p: conv_block_forward(x, p, kernel_size))
    out_nchw = fwd(x_nchw, params)
    jax.block_until_ready(out_nchw)

    assert out_nchw.shape == (batch, out_channels, spatial, spatial)
    assert bool(jnp.all(jnp.isfinite(out_nchw)))
    print("KERNEL_OK")
</pallas_src>

<mosaic_0001>
module attributes {stable_mosaic.version = 11 : i64} {
  func.func @_conv_bn_relu_kernel(%arg0: i32, %arg1: memref<2x18x64xbf16, #tpu.memory_space<vmem>>, %arg2: memref<3x64x128xbf16, #tpu.memory_space<vmem>>, %arg3: memref<128x128xf32, #tpu.memory_space<vmem>>, %arg4: memref<1x128xf32, #tpu.memory_space<vmem>>, %arg5: memref<1x128xf32, #tpu.memory_space<vmem>>, %arg6: memref<2x16x128xbf16, #tpu.memory_space<vmem>>, %arg7: memref<2x16x128xf32, #tpu.memory_space<vmem>>, %arg8: memref<1x128xf32, #tpu.memory_space<vmem>>, %arg9: memref<1x128xf32, #tpu.memory_space<vmem>>) attributes {dimension_semantics = [#tpu.dimension_semantics<arbitrary>], iteration_bounds = array<i64: 1>, scalar_prefetch = 0 : i64, scratch_operands = 3 : i64, tpu.core_type = #tpu.core_type<tc>, window_params = [{transform_indices = @transform_0, window_bounds = array<i64: 2, 18, 64>}, {pipeline_mode = #tpu.pipeline_mode<synchronous>, transform_indices = @transform_1, window_bounds = array<i64: 3, 64, 128>}, {pipeline_mode = #tpu.pipeline_mode<synchronous>, transform_indices = @transform_2, window_bounds = array<i64: 128, 128>}, {pipeline_mode = #tpu.pipeline_mode<synchronous>, transform_indices = @transform_3, window_bounds = array<i64: 1, 128>}, {pipeline_mode = #tpu.pipeline_mode<synchronous>, transform_indices = @transform_4, window_bounds = array<i64: 1, 128>}, {pipeline_mode = #tpu.pipeline_mode<synchronous>, transform_indices = @transform_5, window_bounds = array<i64: 2, 16, 128>}]} {
    %c0 = arith.constant 0 : index
    %c0_0 = arith.constant 0 : index
    %c0_1 = arith.constant 0 : index
    %0 = vector.load %arg1[%c0, %c0_0, %c0_1] : memref<2x18x64xbf16, #tpu.memory_space<vmem>>, vector<2x18x64xbf16>
    %cst = arith.constant 0.000000e+00 : f32
    %1 = vector.broadcast %cst : f32 to vector<32x128xf32>
    %2 = vector.extract_strided_slice %0 {offsets = [0, 0, 0], sizes = [2, 16, 64], strides = [1, 1, 1]} : vector<2x18x64xbf16> to vector<2x16x64xbf16>
    %3 = vector.shape_cast %2 : vector<2x16x64xbf16> to vector<32x64xbf16>
    %c0_2 = arith.constant 0 : index
    %c0_3 = arith.constant 0 : index
    %c0_4 = arith.constant 0 : index
    %4 = vector.load %arg2[%c0_2, %c0_3, %c0_4] : memref<3x64x128xbf16, #tpu.memory_space<vmem>>, vector<1x64x128xbf16>
    %5 = vector.shape_cast %4 : vector<1x64x128xbf16> to vector<64x128xbf16>
    %cst_5 = arith.constant dense<0.000000e+00> : vector<32x128xf32>
    %6 = tpu.matmul %3, %5, %cst_5 {dimension_numbers = #tpu.dot_dimension_numbers<[1], [0], [0], [1], [0, 0, 1, 1], [], []>} : vector<32x64xbf16>, vector<64x128xbf16>, vector<32x128xf32> -> vector<32x128xf32>
    %7 = arith.addf %1, %6 : vector<32x128xf32>
    %8 = vector.extract_strided_slice %0 {offsets = [0, 1, 0], sizes = [2, 16, 64], strides = [1, 1, 1]} : vector<2x18x64xbf16> to vector<2x16x64xbf16>
    %9 = vector.shape_cast %8 : vector<2x16x64xbf16> to vector<32x64xbf16>
    %c1 = arith.constant 1 : index
    %c0_6 = arith.constant 0 : index
    %c0_7 = arith.constant 0 : index
    %10 = vector.load %arg2[%c1, %c0_6, %c0_7] : memref<3x64x128xbf16, #tpu.memory_space<vmem>>, vector<1x64x128xbf16>
    %11 = vector.shape_cast %10 : vector<1x64x128xbf16> to vector<64x128xbf16>
    %cst_8 = arith.constant dense<0.000000e+00> : vector<32x128xf32>
    %12 = tpu.matmul %9, %11, %cst_8 {dimension_numbers = #tpu.dot_dimension_numbers<[1], [0], [0], [1], [0, 0, 1, 1], [], []>} : vector<32x64xbf16>, vector<64x128xbf16>, vector<32x128xf32> -> vector<32x128xf32>
    %13 = arith.addf %7, %12 : vector<32x128xf32>
    %14 = vector.extract_strided_slice %0 {offsets = [0, 2, 0], sizes = [2, 16, 64], strides = [1, 1, 1]} : vector<2x18x64xbf16> to vector<2x16x64xbf16>
    %15 = vector.shape_cast %14 : vector<2x16x64xbf16> to vector<32x64xbf16>
    %c2 = arith.constant 2 : index
    %c0_9 = arith.constant 0 : index
    %c0_10 = arith.constant 0 : index
    %16 = vector.load %arg2[%c2, %c0_9, %c0_10] : memref<3x64x128xbf16, #tpu.memory_space<vmem>>, vector<1x64x128xbf16>
    %17 = vector.shape_cast %16 : vector<1x64x128xbf16> to vector<64x128xbf16>
    %cst_11 = arith.constant dense<0.000000e+00> : vector<32x128xf32>
    %18 = tpu.matmul %15, %17, %cst_11 {dimension_numbers = #tpu.dot_dimension_numbers<[1], [0], [0], [1], [0, 0, 1, 1], [], []>} : vector<32x64xbf16>, vector<64x128xbf16>, vector<32x128xf32> -> vector<32x128xf32>
    %19 = arith.addf %13, %18 : vector<32x128xf32>
    %20 = vector.shape_cast %19 : vector<32x128xf32> to vector<2x16x128xf32>
    %c2_i32 = arith.constant 2 : i32
    %21 = arith.muli %arg0, %c2_i32 : i32
    %22 = arith.index_cast %21 : i32 to index
    %c0_12 = arith.constant 0 : index
    %c0_13 = arith.constant 0 : index
    %23 = vector.load %arg7[%22, %c0_12, %c0_13] : memref<2x16x128xf32, #tpu.memory_space<vmem>>, vector<2x16x128xf32>
    tpu.vector_store %arg7[%22, %c0_12, %c0_13], %20 {strides = array<i32>} : memref<2x16x128xf32, #tpu.memory_space<vmem>>, vector<2x16x128xf32>,
    %cst_14 = arith.constant dense<0.000000e+00> : vector<128xf32>
    %24 = vector.multi_reduction <add>, %19, %cst_14 [0] : vector<32x128xf32> to vector<128xf32>
    %25 = vector.shape_cast %24 : vector<128xf32> to vector<1x128xf32>
    %26 = arith.mulf %19, %19 : vector<32x128xf32>
    %cst_15 = arith.constant dense<0.000000e+00> : vector<128xf32>
    %27 = vector.multi_reduction <add>, %26, %cst_15 [0] : vector<32x128xf32> to vector<128xf32>
    %28 = vector.shape_cast %27 : vector<128xf32> to vector<1x128xf32>
    %c0_i32 = arith.constant 0 : i32
    %29 = arith.cmpi eq, %arg0, %c0_i32 : i32
    %30 = arith.extui %29 : i1 to i32
    %c0_i32_16 = arith.constant 0 : i32
    %31 = arith.cmpi ne, %30, %c0_i32_16 : i32
    scf.if %31 {
      %c0_21 = arith.constant 0 : index
      %c0_22 = arith.constant 0 : index
      %38 = vector.load %arg8[%c0_21, %c0_22] : memref<1x128xf32, #tpu.memory_space<vmem>>, vector<1x128xf32>
      tpu.vector_store %arg8[%c0_21, %c0_22], %25 {strides = array<i32>} : memref<1x128xf32, #tpu.memory_space<vmem>>, vector<1x128xf32>,
      %c0_23 = arith.constant 0 : index
      %c0_24 = arith.constant 0 : index
      %39 = vector.load %arg9[%c0_23, %c0_24] : memref<1x128xf32, #tpu.memory_space<vmem>>, vector<1x128xf32>
      tpu.vector_store %arg9[%c0_23, %c0_24], %28 {strides = array<i32>} : memref<1x128xf32, #tpu.memory_space<vmem>>, vector<1x128xf32>,
    } else {
    }
    %c0_i32_17 = arith.constant 0 : i32
    %32 = arith.cmpi sgt, %arg0, %c0_i32_17 : i32
    %33 = arith.extui %32 : i1 to i32
    %c0_i32_18 = arith.constant 0 : i32
    %34 = arith.cmpi ne, %33, %c0_i32_18 : i32
    scf.if %34 {
      %c0_21 = arith.constant 0 : index
      %c0_22 = arith.constant 0 : index
      %38 = vector.load %arg8[%c0_21, %c0_22] : memref<1x128xf32, #tpu.memory_space<vmem>>, vector<1x128xf32>
      %39 = arith.addf %38, %25 : vector<1x128xf32>
      %c0_23 = arith.constant 0 : index
      %c0_24 = arith.constant 0 : index
      %40 = vector.load %arg8[%c0_23, %c0_24] : memref<1x128xf32, #tpu.memory_space<vmem>>, vector<1x128xf32>
      tpu.vector_store %arg8[%c0_23, %c0_24], %39 {strides = array<i32>} : memref<1x128xf32, #tpu.memory_space<vmem>>, vector<1x128xf32>,
      %c0_25 = arith.constant 0 : index
      %c0_26 = arith.constant 0 : index
      %41 = vector.load %arg9[%c0_25, %c0_26] : memref<1x128xf32, #tpu.memory_space<vmem>>, vector<1x128xf32>
      %42 = arith.addf %41, %28 : vector<1x128xf32>
      %c0_27 = arith.constant 0 : index
      %c0_28 = arith.constant 0 : index
      %43 = vector.load %arg9[%c0_27, %c0_28] : memref<1x128xf32, #tpu.memory_space<vmem>>, vector<1x128xf32>
      tpu.vector_store %arg9[%c0_27, %c0_28], %42 {strides = array<i32>} : memref<1x128xf32, #tpu.memory_space<vmem>>, vector<1x128xf32>,
    } else {
    }
    %c0_i32_19 = arith.constant 0 : i32
    %35 = arith.cmpi eq, %arg0, %c0_i32_19 : i32
    %36 = arith.extui %35 : i1 to i32
    %c0_i32_20 = arith.constant 0 : i32
    %37 = arith.cmpi ne, %36, %c0_i32_20 : i32
    scf.if %37 {
      %c0_21 = arith.constant 0 : index
      %c0_22 = arith.constant 0 : index
      %38 = vector.load %arg8[%c0_21, %c0_22] : memref<1x128xf32, #tpu.memory_space<vmem>>, vector<1x128xf32>
      %c0_23 = arith.constant 0 : index
      %c0_24 = arith.constant 0 : index
      %39 = vector.load %arg3[%c0_23, %c0_24] : memref<128x128xf32, #tpu.memory_space<vmem>>, vector<128x128xf32>
      %cst_25 = arith.constant dense<0.000000e+00> : vector<1x128xf32>
      %40 = tpu.matmul %38, %39, %cst_25 {dimension_numbers = #tpu.dot_dimension_numbers<[1], [0], [0], [1], [0, 0, 1, 1], [], []>} : vector<1x128xf32>, vector<128x128xf32>, vector<1x128xf32> -> vector<1x128xf32>
      %c0_26 = arith.constant 0 : index
      %c0_27 = arith.constant 0 : index
      %41 = vector.load %arg9[%c0_26, %c0_27] : memref<1x128xf32, #tpu.memory_space<vmem>>, vector<1x128xf32>
      %c0_28 = arith.constant 0 : index
      %c0_29 = arith.constant 0 : index
      %42 = vector.load %arg3[%c0_28, %c0_29] : memref<128x128xf32, #tpu.memory_space<vmem>>, vector<128x128xf32>
      %cst_30 = arith.constant dense<0.000000e+00> : vector<1x128xf32>
      %43 = tpu.matmul %41, %42, %cst_30 {dimension_numbers = #tpu.dot_dimension_numbers<[1], [0], [0], [1], [0, 0, 1, 1], [], []>} : vector<1x128xf32>, vector<128x128xf32>, vector<1x128xf32> -> vector<1x128xf32>
      %cst_31 = arith.constant 0.001953125 : f32
      %44 = vector.broadcast %cst_31 : f32 to vector<1x128xf32>
      %45 = arith.mulf %40, %44 : vector<1x128xf32>
      %cst_32 = arith.constant 0.001953125 : f32
      %46 = vector.broadcast %cst_32 : f32 to vector<1x128xf32>
      %47 = arith.mulf %43, %46 : vector<1x128xf32>
      %48 = arith.mulf %45, %45 : vector<1x128xf32>
      %49 = arith.subf %47, %48 : vector<1x128xf32>
      %cst_33 = arith.constant 9.99999974E-6 : f32
      %50 = vector.broadcast %cst_33 : f32 to vector<1x128xf32>
      %51 = arith.addf %49, %50 : vector<1x128xf32>
      %52 = math.rsqrt %51 : vector<1x128xf32>
      %c0_34 = arith.constant 0 : index
      %c0_35 = arith.constant 0 : index
      %53 = vector.load %arg4[%c0_34, %c0_35] : memref<1x128xf32, #tpu.memory_space<vmem>>, vector<1x128xf32>
      %54 = arith.mulf %53, %52 : vector<1x128xf32>
      %c0_36 = arith.constant 0 : index
      %c0_37 = arith.constant 0 : index
      %55 = vector.load %arg5[%c0_36, %c0_37] : memref<1x128xf32, #tpu.memory_space<vmem>>, vector<1x128xf32>
      %56 = arith.mulf %45, %54 : vector<1x128xf32>
      %57 = arith.subf %55, %56 : vector<1x128xf32>
      %c0_38 = arith.constant 0 : index
      %c0_39 = arith.constant 0 : index
      %c0_40 = arith.constant 0 : index
      %58 = vector.load %arg7[%c0_38, %c0_39, %c0_40] : memref<2x16x128xf32, #tpu.memory_space<vmem>>, vector<2x16x128xf32>
      %59 = vector.shape_cast %54 : vector<1x128xf32> to vector<1x1x128xf32>
      %60 = vector.broadcast %59 : vector<1x1x128xf32> to vector<2x16x128xf32>
      %61 = arith.mulf %58, %60 : vector<2x16x128xf32>
      %62 = vector.shape_cast %57 : vector<1x128xf32> to vector<1x1x128xf32>
      %63 = vector.broadcast %62 : vector<1x1x128xf32> to vector<2x16x128xf32>
      %64 = arith.addf %61, %63 : vector<2x16x128xf32>
      %cst_41 = arith.constant 0.000000e+00 : f32
      %65 = vector.broadcast %cst_41 : f32 to vector<2x16x128xf32>
      %66 = arith.maximumf %64, %65 : vector<2x16x128xf32>
      %67 = arith.truncf %66 : vector<2x16x128xf32> to vector<2x16x128xbf16>
      %c0_42 = arith.constant 0 : index
      %c0_43 = arith.constant 0 : index
      %c0_44 = arith.constant 0 : index
      %68 = vector.load %arg6[%c0_42, %c0_43, %c0_44] : memref<2x16x128xbf16, #tpu.memory_space<vmem>>, vector<2x16x128xbf16>
      tpu.vector_store %arg6[%c0_42, %c0_43, %c0_44], %67 {strides = array<i32>} : memref<2x16x128xbf16, #tpu.memory_space<vmem>>, vector<2x16x128xbf16>,
    } else {
    }
    return
  }
  func.func @transform_0(%arg0: i32) -> (i32, i32, i32) {
    %c0_i32 = arith.constant 0 : i32
    %c0_i32_0 = arith.constant 0 : i32
    %c0_i32_1 = arith.constant 0 : i32
    return %arg0, %c0_i32, %c0_i32_0 : i32, i32, i32
  }
  func.func @transform_1(%arg0: i32) -> (i32, i32, i32) {
    %c0_i32 = arith.constant 0 : i32
    %c0_i32_0 = arith.constant 0 : i32
    %c0_i32_1 = arith.constant 0 : i32
    %c0_i32_2 = arith.constant 0 : i32
    return %c0_i32, %c0_i32_0, %c0_i32_1 : i32, i32, i32
  }
  func.func @transform_2(%arg0: i32) -> (i32, i32) {
    %c0_i32 = arith.constant 0 : i32
    %c0_i32_0 = arith.constant 0 : i32
    %c0_i32_1 = arith.constant 0 : i32
    return %c0_i32, %c0_i32_0 : i32, i32
  }
  func.func @transform_3(%arg0: i32) -> (i32, i32) {
    %c0_i32 = arith.constant 0 : i32
    %c0_i32_0 = arith.constant 0 : i32
    %c0_i32_1 = arith.constant 0 : i32
    return %c0_i32, %c0_i32_0 : i32, i32
  }
  func.func @transform_4(%arg0: i32) -> (i32, i32) {
    %c0_i32 = arith.constant 0 : i32
    %c0_i32_0 = arith.constant 0 : i32
    %c0_i32_1 = arith.constant 0 : i32
    return %c0_i32, %c0_i32_0 : i32, i32
  }
  func.func @transform_5(%arg0: i32) -> (i32, i32, i32) {
    %c0_i32 = arith.constant 0 : i32
    %c0_i32_0 = arith.constant 0 : i32
    %c0_i32_1 = arith.constant 0 : i32
    %c0_i32_2 = arith.constant 0 : i32
    return %c0_i32, %c0_i32_0, %c0_i32_1 : i32, i32, i32
  }
}

module attributes {stable_mosaic.version = 11 : i64} {
  func.func @_conv_bn_relu_kernel(%arg0: i32, %arg1: memref<2x18x128xbf16, #tpu.memory_space<vmem>>, %arg2: memref<3x128x128xbf16, #tpu.memory_space<vmem>>, %arg3: memref<128x128xf32, #tpu.memory_space<vmem>>, %arg4: memref<1x128xf32, #tpu.memory_space<vmem>>, %arg5: memref<1x128xf32, #tpu.memory_space<vmem>>, %arg6: memref<2x16x128xbf16, #tpu.memory_space<vmem>>, %arg7: memref<2x16x128xf32, #tpu.memory_space<vmem>>, %arg8: memref<1x128xf32, #tpu.memory_space<vmem>>, %arg9: memref<1x128xf32, #tpu.memory_space<vmem>>) attributes {dimension_semantics = [#tpu.dimension_semantics<arbitrary>], iteration_bounds = array<i64: 1>, scalar_prefetch = 0 : i64, scratch_operands = 3 : i64, tpu.core_type = #tpu.core_type<tc>, window_params = [{transform_indices = @transform_0, window_bounds = array<i64: 2, 18, 128>}, {pipeline_mode = #tpu.pipeline_mode<synchronous>, transform_indices = @transform_1, window_bounds = array<i64: 3, 128, 128>}, {pipeline_mode = #tpu.pipeline_mode<synchronous>, transform_indices = @transform_2, window_bounds = array<i64: 128, 128>}, {pipeline_mode = #tpu.pipeline_mode<synchronous>, transform_indices = @transform_3, window_bounds = array<i64: 1, 128>}, {pipeline_mode = #tpu.pipeline_mode<synchronous>, transform_indices = @transform_4, window_bounds = array<i64: 1, 128>}, {pipeline_mode = #tpu.pipeline_mode<synchronous>, transform_indices = @transform_5, window_bounds = array<i64: 2, 16, 128>}]} {
    %c0 = arith.constant 0 : index
    %c0_0 = arith.constant 0 : index
    %c0_1 = arith.constant 0 : index
    %0 = vector.load %arg1[%c0, %c0_0, %c0_1] : memref<2x18x128xbf16, #tpu.memory_space<vmem>>, vector<2x18x128xbf16>
    %cst = arith.constant 0.000000e+00 : f32
    %1 = vector.broadcast %cst : f32 to vector<32x128xf32>
    %2 = vector.extract_strided_slice %0 {offsets = [0, 0, 0], sizes = [2, 16, 128], strides = [1, 1, 1]} : vector<2x18x128xbf16> to vector<2x16x128xbf16>
    %3 = vector.shape_cast %2 : vector<2x16x128xbf16> to vector<32x128xbf16>
    %c0_2 = arith.constant 0 : index
    %c0_3 = arith.constant 0 : index
    %c0_4 = arith.constant 0 : index
    %4 = vector.load %arg2[%c0_2, %c0_3, %c0_4] : memref<3x128x128xbf16, #tpu.memory_space<vmem>>, vector<1x128x128xbf16>
    %5 = vector.shape_cast %4 : vector<1x128x128xbf16> to vector<128x128xbf16>
    %cst_5 = arith.constant dense<0.000000e+00> : vector<32x128xf32>
    %6 = tpu.matmul %3, %5, %cst_5 {dimension_numbers = #tpu.dot_dimension_numbers<[1], [0], [0], [1], [0, 0, 1, 1], [], []>} : vector<32x128xbf16>, vector<128x128xbf16>, vector<32x128xf32> -> vector<32x128xf32>
    %7 = arith.addf %1, %6 : vector<32x128xf32>
    %8 = vector.extract_strided_slice %0 {offsets = [0, 1, 0], sizes = [2, 16, 128], strides = [1, 1, 1]} : vector<2x18x128xbf16> to vector<2x16x128xbf16>
    %9 = vector.shape_cast %8 : vector<2x16x128xbf16> to vector<32x128xbf16>
    %c1 = arith.constant 1 : index
    %c0_6 = arith.constant 0 : index
    %c0_7 = arith.constant 0 : index
    %10 = vector.load %arg2[%c1, %c0_6, %c0_7] : memref<3x128x128xbf16, #tpu.memory_space<vmem>>, vector<1x128x128xbf16>
    %11 = vector.shape_cast %10 : vector<1x128x128xbf16> to vector<128x128xbf16>
    %cst_8 = arith.constant dense<0.000000e+00> : vector<32x128xf32>
    %12 = tpu.matmul %9, %11, %cst_8 {dimension_numbers = #tpu.dot_dimension_numbers<[1], [0], [0], [1], [0, 0, 1, 1], [], []>} : vector<32x128xbf16>, vector<128x128xbf16>, vector<32x128xf32> -> vector<32x128xf32>
    %13 = arith.addf %7, %12 : vector<32x128xf32>
    %14 = vector.extract_strided_slice %0 {offsets = [0, 2, 0], sizes = [2, 16, 128], strides = [1, 1, 1]} : vector<2x18x128xbf16> to vector<2x16x128xbf16>
    %15 = vector.shape_cast %14 : vector<2x16x128xbf16> to vector<32x128xbf16>
    %c2 = arith.constant 2 : index
    %c0_9 = arith.constant 0 : index
    %c0_10 = arith.constant 0 : index
    %16 = vector.load %arg2[%c2, %c0_9, %c0_10] : memref<3x128x128xbf16, #tpu.memory_space<vmem>>, vector<1x128x128xbf16>
    %17 = vector.shape_cast %16 : vector<1x128x128xbf16> to vector<128x128xbf16>
    %cst_11 = arith.constant dense<0.000000e+00> : vector<32x128xf32>
    %18 = tpu.matmul %15, %17, %cst_11 {dimension_numbers = #tpu.dot_dimension_numbers<[1], [0], [0], [1], [0, 0, 1, 1], [], []>} : vector<32x128xbf16>, vector<128x128xbf16>, vector<32x128xf32> -> vector<32x128xf32>
    %19 = arith.addf %13, %18 : vector<32x128xf32>
    %20 = vector.shape_cast %19 : vector<32x128xf32> to vector<2x16x128xf32>
    %c2_i32 = arith.constant 2 : i32
    %21 = arith.muli %arg0, %c2_i32 : i32
    %22 = arith.index_cast %21 : i32 to index
    %c0_12 = arith.constant 0 : index
    %c0_13 = arith.constant 0 : index
    %23 = vector.load %arg7[%22, %c0_12, %c0_13] : memref<2x16x128xf32, #tpu.memory_space<vmem>>, vector<2x16x128xf32>
    tpu.vector_store %arg7[%22, %c0_12, %c0_13], %20 {strides = array<i32>} : memref<2x16x128xf32, #tpu.memory_space<vmem>>, vector<2x16x128xf32>,
    %cst_14 = arith.constant dense<0.000000e+00> : vector<128xf32>
    %24 = vector.multi_reduction <add>, %19, %cst_14 [0] : vector<32x128xf32> to vector<128xf32>
    %25 = vector.shape_cast %24 : vector<128xf32> to vector<1x128xf32>
    %26 = arith.mulf %19, %19 : vector<32x128xf32>
    %cst_15 = arith.constant dense<0.000000e+00> : vector<128xf32>
    %27 = vector.multi_reduction <add>, %26, %cst_15 [0] : vector<32x128xf32> to vector<128xf32>
    %28 = vector.shape_cast %27 : vector<128xf32> to vector<1x128xf32>
    %c0_i32 = arith.constant 0 : i32
    %29 = arith.cmpi eq, %arg0, %c0_i32 : i32
    %30 = arith.extui %29 : i1 to i32
    %c0_i32_16 = arith.constant 0 : i32
    %31 = arith.cmpi ne, %30, %c0_i32_16 : i32
    scf.if %31 {
      %c0_21 = arith.constant 0 : index
      %c0_22 = arith.constant 0 : index
      %38 = vector.load %arg8[%c0_21, %c0_22] : memref<1x128xf32, #tpu.memory_space<vmem>>, vector<1x128xf32>
      tpu.vector_store %arg8[%c0_21, %c0_22], %25 {strides = array<i32>} : memref<1x128xf32, #tpu.memory_space<vmem>>, vector<1x128xf32>,
      %c0_23 = arith.constant 0 : index
      %c0_24 = arith.constant 0 : index
      %39 = vector.load %arg9[%c0_23, %c0_24] : memref<1x128xf32, #tpu.memory_space<vmem>>, vector<1x128xf32>
      tpu.vector_store %arg9[%c0_23, %c0_24], %28 {strides = array<i32>} : memref<1x128xf32, #tpu.memory_space<vmem>>, vector<1x128xf32>,
    } else {
    }
    %c0_i32_17 = arith.constant 0 : i32
    %32 = arith.cmpi sgt, %arg0, %c0_i32_17 : i32
    %33 = arith.extui %32 : i1 to i32
    %c0_i32_18 = arith.constant 0 : i32
    %34 = arith.cmpi ne, %33, %c0_i32_18 : i32
    scf.if %34 {
      %c0_21 = arith.constant 0 : index
      %c0_22 = arith.constant 0 : index
      %38 = vector.load %arg8[%c0_21, %c0_22] : memref<1x128xf32, #tpu.memory_space<vmem>>, vector<1x128xf32>
      %39 = arith.addf %38, %25 : vector<1x128xf32>
      %c0_23 = arith.constant 0 : index
      %c0_24 = arith.constant 0 : index
      %40 = vector.load %arg8[%c0_23, %c0_24] : memref<1x128xf32, #tpu.memory_space<vmem>>, vector<1x128xf32>
      tpu.vector_store %arg8[%c0_23, %c0_24], %39 {strides = array<i32>} : memref<1x128xf32, #tpu.memory_space<vmem>>, vector<1x128xf32>,
      %c0_25 = arith.constant 0 : index
      %c0_26 = arith.constant 0 : index
      %41 = vector.load %arg9[%c0_25, %c0_26] : memref<1x128xf32, #tpu.memory_space<vmem>>, vector<1x128xf32>
      %42 = arith.addf %41, %28 : vector<1x128xf32>
      %c0_27 = arith.constant 0 : index
      %c0_28 = arith.constant 0 : index
      %43 = vector.load %arg9[%c0_27, %c0_28] : memref<1x128xf32, #tpu.memory_space<vmem>>, vector<1x128xf32>
      tpu.vector_store %arg9[%c0_27, %c0_28], %42 {strides = array<i32>} : memref<1x128xf32, #tpu.memory_space<vmem>>, vector<1x128xf32>,
    } else {
    }
    %c0_i32_19 = arith.constant 0 : i32
    %35 = arith.cmpi eq, %arg0, %c0_i32_19 : i32
    %36 = arith.extui %35 : i1 to i32
    %c0_i32_20 = arith.constant 0 : i32
    %37 = arith.cmpi ne, %36, %c0_i32_20 : i32
    scf.if %37 {
      %c0_21 = arith.constant 0 : index
      %c0_22 = arith.constant 0 : index
      %38 = vector.load %arg8[%c0_21, %c0_22] : memref<1x128xf32, #tpu.memory_space<vmem>>, vector<1x128xf32>
      %c0_23 = arith.constant 0 : index
      %c0_24 = arith.constant 0 : index
      %39 = vector.load %arg3[%c0_23, %c0_24] : memref<128x128xf32, #tpu.memory_space<vmem>>, vector<128x128xf32>
      %cst_25 = arith.constant dense<0.000000e+00> : vector<1x128xf32>
      %40 = tpu.matmul %38, %39, %cst_25 {dimension_numbers = #tpu.dot_dimension_numbers<[1], [0], [0], [1], [0, 0, 1, 1], [], []>} : vector<1x128xf32>, vector<128x128xf32>, vector<1x128xf32> -> vector<1x128xf32>
      %c0_26 = arith.constant 0 : index
      %c0_27 = arith.constant 0 : index
      %41 = vector.load %arg9[%c0_26, %c0_27] : memref<1x128xf32, #tpu.memory_space<vmem>>, vector<1x128xf32>
      %c0_28 = arith.constant 0 : index
      %c0_29 = arith.constant 0 : index
      %42 = vector.load %arg3[%c0_28, %c0_29] : memref<128x128xf32, #tpu.memory_space<vmem>>, vector<128x128xf32>
      %cst_30 = arith.constant dense<0.000000e+00> : vector<1x128xf32>
      %43 = tpu.matmul %41, %42, %cst_30 {dimension_numbers = #tpu.dot_dimension_numbers<[1], [0], [0], [1], [0, 0, 1, 1], [], []>} : vector<1x128xf32>, vector<128x128xf32>, vector<1x128xf32> -> vector<1x128xf32>
      %cst_31 = arith.constant 0.001953125 : f32
      %44 = vector.broadcast %cst_31 : f32 to vector<1x128xf32>
      %45 = arith.mulf %40, %44 : vector<1x128xf32>
      %cst_32 = arith.constant 0.001953125 : f32
      %46 = vector.broadcast %cst_32 : f32 to vector<1x128xf32>
      %47 = arith.mulf %43, %46 : vector<1x128xf32>
      %48 = arith.mulf %45, %45 : vector<1x128xf32>
      %49 = arith.subf %47, %48 : vector<1x128xf32>
      %cst_33 = arith.constant 9.99999974E-6 : f32
      %50 = vector.broadcast %cst_33 : f32 to vector<1x128xf32>
      %51 = arith.addf %49, %50 : vector<1x128xf32>
      %52 = math.rsqrt %51 : vector<1x128xf32>
      %c0_34 = arith.constant 0 : index
      %c0_35 = arith.constant 0 : index
      %53 = vector.load %arg4[%c0_34, %c0_35] : memref<1x128xf32, #tpu.memory_space<vmem>>, vector<1x128xf32>
      %54 = arith.mulf %53, %52 : vector<1x128xf32>
      %c0_36 = arith.constant 0 : index
      %c0_37 = arith.constant 0 : index
      %55 = vector.load %arg5[%c0_36, %c0_37] : memref<1x128xf32, #tpu.memory_space<vmem>>, vector<1x128xf32>
      %56 = arith.mulf %45, %54 : vector<1x128xf32>
      %57 = arith.subf %55, %56 : vector<1x128xf32>
      %c0_38 = arith.constant 0 : index
      %c0_39 = arith.constant 0 : index
      %c0_40 = arith.constant 0 : index
      %58 = vector.load %arg7[%c0_38, %c0_39, %c0_40] : memref<2x16x128xf32, #tpu.memory_space<vmem>>, vector<2x16x128xf32>
      %59 = vector.shape_cast %54 : vector<1x128xf32> to vector<1x1x128xf32>
      %60 = vector.broadcast %59 : vector<1x1x128xf32> to vector<2x16x128xf32>
      %61 = arith.mulf %58, %60 : vector<2x16x128xf32>
      %62 = vector.shape_cast %57 : vector<1x128xf32> to vector<1x1x128xf32>
      %63 = vector.broadcast %62 : vector<1x1x128xf32> to vector<2x16x128xf32>
      %64 = arith.addf %61, %63 : vector<2x16x128xf32>
      %cst_41 = arith.constant 0.000000e+00 : f32
      %65 = vector.broadcast %cst_41 : f32 to vector<2x16x128xf32>
      %66 = arith.maximumf %64, %65 : vector<2x16x128xf32>
      %67 = arith.truncf %66 : vector<2x16x128xf32> to vector<2x16x128xbf16>
      %c0_42 = arith.constant 0 : index
      %c0_43 = arith.constant 0 : index
      %c0_44 = arith.constant 0 : index
      %68 = vector.load %arg6[%c0_42, %c0_43, %c0_44] : memref<2x16x128xbf16, #tpu.memory_space<vmem>>, vector<2x16x128xbf16>
      tpu.vector_store %arg6[%c0_42, %c0_43, %c0_44], %67 {strides = array<i32>} : memref<2x16x128xbf16, #tpu.memory_space<vmem>>, vector<2x16x128xbf16>,
    } else {
    }
    return
  }
  func.func @transform_0(%arg0: i32) -> (i32, i32, i32) {
    %c0_i32 = arith.constant 0 : i32
    %c0_i32_0 = arith.constant 0 : i32
    %c0_i32_1 = arith.constant 0 : i32
    return %arg0, %c0_i32, %c0_i32_0 : i32, i32, i32
  }
  func.func @transform_1(%arg0: i32) -> (i32, i32, i32) {
    %c0_i32 = arith.constant 0 : i32
    %c0_i32_0 = arith.constant 0 : i32
    %c0_i32_1 = arith.constant 0 : i32
    %c0_i32_2 = arith.constant 0 : i32
    return %c0_i32, %c0_i32_0, %c0_i32_1 : i32, i32, i32
  }
  func.func @transform_2(%arg0: i32) -> (i32, i32) {
    %c0_i32 = arith.constant 0 : i32
    %c0_i32_0 = arith.constant 0 : i32
    %c0_i32_1 = arith.constant 0 : i32
    return %c0_i32, %c0_i32_0 : i32, i32
  }
  func.func @transform_3(%arg0: i32) -> (i32, i32) {
    %c0_i32 = arith.constant 0 : i32
    %c0_i32_0 = arith.constant 0 : i32
    %c0_i32_1 = arith.constant 0 : i32
    return %c0_i32, %c0_i32_0 : i32, i32
  }
  func.func @transform_4(%arg0: i32) -> (i32, i32) {
    %c0_i32 = arith.constant 0 : i32
    %c0_i32_0 = arith.constant 0 : i32
    %c0_i32_1 = arith.constant 0 : i32
    return %c0_i32, %c0_i32_0 : i32, i32
  }
  func.func @transform_5(%arg0: i32) -> (i32, i32, i32) {
    %c0_i32 = arith.constant 0 : i32
    %c0_i32_0 = arith.constant 0 : i32
    %c0_i32_1 = arith.constant 0 : i32
    %c0_i32_2 = arith.constant 0 : i32
    return %c0_i32, %c0_i32_0, %c0_i32_1 : i32, i32, i32
  }
}

</mosaic_0001>

<llo_original>
// kernel: tile.23
$region0: #{tile.23}
  #allocation0 [shape = 's32[1]{0}', space=sflag, size = 0x4, scoped, tag = 'scoped memory for tile.23']
  %s0 = inlined_call_operand.vmem [shape: f32[8], index: 0, kind: input, shape index: {}]
  %s1 = inlined_call_operand.vmem [shape: f32[16,8], index: 1, kind: output, shape index: {}]
  // Predicated region
  $region2: #{tile.23} parent=0 // pred_check
    _
  $region3: #{tile.23} parent=0 // pred_check_branch
    %3 = sbr.rel (0) target = $region5
  $region4: #{tile.23} parent=0 // pred_region
    _
  $region5: #{tile.23} parent=0 // pred_fallthru
    _
  %v4 = vld [vmem:[%s0] ss:$0 sm:$0xff]
  %5 = vst [vmem:[%s1] sm:$0xff] %v4
  %s6 = scalar_lea.vmem %s1, 8
  %7 = vst [vmem:[%s6] sm:$0xff] %v4

// kernel: tile.24
$region0: #{tile.24}
  %s0 = inlined_call_operand.vmem [shape: f32[16,8], index: 0, kind: input, shape index: {}]
  %s1 = inlined_call_operand.vmem [shape: f32[1,128], index: 1, kind: output, shape index: {}]
  $region1: #{tile.24} parent=0
    #allocation0 [shape = 'u8[4096]{0}', space=vmem, size = 0x1000, scoped, tag = 'scoped mem for output reshape']
    %v2 = vld [vmem:[%s0] sm:$0x1]
    %vm3 = vcmask 64512
    %4 = vst.msk [vmem:[#allocation0] sm:$0x1] %vm3, %v2
    %s5 = scalar_lea.vmem %s0, 15
    %v6 = vld [vmem:[%s5] sm:$0x1]
    %7 = vrot.lane.b32.xlu0 %v6, 120
    %v8 = vpop.permute.xlu0 %7
    %vm9 = vcmask 1048512
    %10 = vst.msk [vmem:[#allocation0] sm:$0x1] %vm9, %v8
    %s11 = scalar_lea.vmem %s0, 14
    %v12 = vld [vmem:[%s11] sm:$0x1]
    %13 = vrot.lane.b32.xlu0 %v12, 112
    %v14 = vpop.permute.xlu0 %13
    %vm15 = vcmask 982912
    %16 = vst.msk [vmem:[#allocation0] sm:$0x1] %vm15, %v14
    %s17 = scalar_lea.vmem %s0, 13
    %v18 = vld [vmem:[%s17] sm:$0x1]
    %19 = vrot.lane.b32.xlu0 %v18, 104
    %v20 = vpop.permute.xlu0 %19
    %vm21 = vcmask 917312
    %22 = vst.msk [vmem:[#allocation0] sm:$0x1] %vm21, %v20
    %s23 = scalar_lea.vmem %s0, 12
    %v24 = vld [vmem:[%s23] sm:$0x1]
    %25 = vrot.lane.b32.xlu0 %v24, 96
    %v26 = vpop.permute.xlu0 %25
    %vm27 = vcmask 851712
    %28 = vst.msk [vmem:[#allocation0] sm:$0x1] %vm27, %v26
    %s29 = scalar_lea.vmem %s0, 11
    %v30 = vld [vmem:[%s29] sm:$0x1]
    %31 = vrot.lane.b32.xlu0 %v30, 88
    %v32 = vpop.permute.xlu0 %31
    %vm33 = vcmask 786112
    %34 = vst.msk [vmem:[#allocation0] sm:$0x1] %vm33, %v32
    %s35 = scalar_lea.vmem %s0, 10
    %v36 = vld [vmem:[%s35] sm:$0x1]
    %37 = vrot.lane.b32.xlu0 %v36, 80
    %v38 = vpop.permute.xlu0 %37
    %vm39 = vcmask 720512
    %40 = vst.msk [vmem:[#allocation0] sm:$0x1] %vm39, %v38
    %s41 = scalar_lea.vmem %s0, 9
    %v42 = vld [vmem:[%s41] sm:$0x1]
    %43 = vrot.lane.b32.xlu0 %v42, 72
    %v44 = vpop.permute.xlu0 %43
    %vm45 = vcmask 654912
    %46 = vst.msk [vmem:[#allocation0] sm:$0x1] %vm45, %v44
    %s47 = scalar_lea.vmem %s0, 8
    %v48 = vld [vmem:[%s47] sm:$0x1]
    %49 = vrot.lane.b32.xlu0 %v48, 64
    %v50 = vpop.permute.xlu0 %49
    %vm51 = vcmask 589312
    %52 = vst.msk [vmem:[#allocation0] sm:$0x1] %vm51, %v50
    %s53 = scalar_lea.vmem %s0, 7
    %v54 = vld [vmem:[%s53] sm:$0x1]
    %55 = vrot.lane.b32.xlu0 %v54, 56
    %v56 = vpop.permute.xlu0 %55
    %vm57 = vcmask 523712
    %58 = vst.msk [vmem:[#allocation0] sm:$0x1] %vm57, %v56
    %s59 = scalar_lea.vmem %s0, 6
    %v60 = vld [vmem:[%s59] sm:$0x1]
    %61 = vrot.lane.b32.xlu0 %v60, 48
    %v62 = vpop.permute.xlu0 %61
    %vm63 = vcmask 458112
    %64 = vst.msk [vmem:[#allocation0] sm:$0x1] %vm63, %v62
    %s65 = scalar_lea.vmem %s0, 5
    %v66 = vld [vmem:[%s65] sm:$0x1]
    %67 = vrot.lane.b32.xlu0 %v66, 40
    %v68 = vpop.permute.xlu0 %67
    %vm69 = vcmask 392512
    %70 = vst.msk [vmem:[#allocation0] sm:$0x1] %vm69, %v68
    %s71 = scalar_lea.vmem %s0, 4
    %v72 = vld [vmem:[%s71] sm:$0x1]
    %73 = vrot.lane.b32.xlu0 %v72, 32
    %v74 = vpop.permute.xlu0 %73
    %vm75 = vcmask 326912
    %76 = vst.msk [vmem:[#allocation0] sm:$0x1] %vm75, %v74
    %s77 = scalar_lea.vmem %s0, 3
    %v78 = vld [vmem:[%s77] sm:$0x1]
    %79 = vrot.lane.b32.xlu0 %v78, 24
    %v80 = vpop.permute.xlu0 %79
    %vm81 = vcmask 261312
    %82 = vst.msk [vmem:[#allocation0] sm:$0x1] %vm81, %v80
    %s83 = scalar_lea.vmem %s0, 2
    %v84 = vld [vmem:[%s83] sm:$0x1]
    %85 = vrot.lane.b32.xlu0 %v84, 16
    %v86 = vpop.permute.xlu0 %85
    %vm87 = vcmask 195712
    %88 = vst.msk [vmem:[#allocation0] sm:$0x1] %vm87, %v86
    %s89 = scalar_lea.vmem %s0, 1
    %v90 = vld [vmem:[%s89] sm:$0x1]
    %91 = vrot.lane.b32.xlu0 %v90, 8
    %v92 = vpop.permute.xlu0 %91
    %vm93 = vcmask 130112
    %94 = vst.msk [vmem:[#allocation0] sm:$0x1] %vm93, %v92
    %s96 = sshllo.u32 0, 1
    %v98 = vld [vmem:[#allocation0] sm:%s96]
    %s99 = sshllo.u32 0, 1
    %100 = vst [vmem:[%s1] sm:%s99] %v98

// kernel: _lambda_.2
$region0: #{_lambda_.2}
  #allocation0 [shape = 'u32[]', space=smem, size = 0x4, offset = 0x4, fixed_abs, tag = 'smem constant byte address 0x4 - core index']
  #allocation1 [shape = 'u32[144,128]{1,0:T(1,128)}', space=vmem, size = 0x12000, scoped, tag = 'internal scratch']
  #allocation2 [shape = 'f32[2,16,128]{2,1,0:T(8,128)}', space=vmem, size = 0x4000, scoped, tag = 'scratch operand']
  #allocation3 [shape = 'f32[1,128]{1,0:T(1,128)}', space=vmem, size = 0x200, scoped, tag = 'scratch operand']
  #allocation4 [shape = 'f32[1,128]{1,0:T(1,128)}', space=vmem, size = 0x200, scoped, tag = 'scratch operand']
  %s0 = inlined_call_operand.vmem [shape: bf16[2,18,64], index: 0, kind: input, shape index: {}]
  %s1 = inlined_call_operand.vmem [shape: bf16[3,64,128], index: 1, kind: input, shape index: {}]
  %s2 = inlined_call_operand.vmem [shape: f32[128,128], index: 2, kind: input, shape index: {}]
  %s3 = inlined_call_operand.vmem [shape: f32[1,128], index: 3, kind: input, shape index: {}]
  %s4 = inlined_call_operand.vmem [shape: f32[1,128], index: 4, kind: input, shape index: {}]
  %s5 = inlined_call_operand.vmem [shape: bf16[2,16,128], index: 5, kind: output, shape index: {}]
  %s6 = sld [smem:[#allocation0]]
  $region42: #{_lambda_.2} parent=0
    _
  %s8 = ssub.s32 1, %s6
  %s9 = scalar_select 0, %s8, %s6
  // Predicated region
  $region2: #{_lambda_.2} parent=0 // pred_check
    _
  $region3: #{_lambda_.2} parent=0 // pred_check_branch
    %11 = sbr.rel (0) target = $region5
  $region4: #{_lambda_.2} parent=0 // pred_region
    _
  $region5: #{_lambda_.2} parent=0 // pred_fallthru
    _
  // Predicated region
  $region6: #{_lambda_.2} parent=0 // pred_check
    _
  $region7: #{_lambda_.2} parent=0 // pred_check_branch
    %13 = sbr.rel (0) target = $region9
  $region8: #{_lambda_.2} parent=0 // pred_region
    _
  $region9: #{_lambda_.2} parent=0 // pred_fallthru
    _
  // Predicated region
  $region10: #{_lambda_.2} parent=0 // pred_check
    _
  $region11: #{_lambda_.2} parent=0 // pred_check_branch
    %15 = sbr.rel (0) target = $region13
  $region12: #{_lambda_.2} parent=0 // pred_region
    _
  $region13: #{_lambda_.2} parent=0 // pred_fallthru
    _
  // Predicated region
  $region14: #{_lambda_.2} parent=0 // pred_check
    _
  $region15: #{_lambda_.2} parent=0 // pred_check_branch
    %17 = sbr.rel (0) target = $region17
  $region16: #{_lambda_.2} parent=0 // pred_region
    _
  $region17: #{_lambda_.2} parent=0 // pred_fallthru
    _
  // Predicated region
  $region18: #{_lambda_.2} parent=0 // pred_check
    _
  $region19: #{_lambda_.2} parent=0 // pred_check_branch
    %19 = sbr.rel (0) target = $region21
  $region20: #{_lambda_.2} parent=0 // pred_region
    _
  $region21: #{_lambda_.2} parent=0 // pred_fallthru
    _
  %v21 = vld [vmem:[%s0] sm:$0xf]
  %v22 = vld [vmem:[%s0 + $0x4] sm:$0xf]
  %v23 = vld [vmem:[%s0 + $0x8] sm:$0x1]
  %v24 = vld [vmem:[%s0 + $0xc] sm:$0xf]
  %v25 = vld [vmem:[%s0 + $0x10] sm:$0xf]
  %v26 = vld [vmem:[%s0 + $0x14] sm:$0x1]
  %v27 = vld [vmem:[%s1] sm:$0xf]
  %v28 = vld [vmem:[%s1 + $0x4] sm:$0xf]
  %v29 = vld [vmem:[%s1 + $0x8] sm:$0xf]
  %v30 = vld [vmem:[%s1 + $0xc] sm:$0xf]
  %v31 = vld [vmem:[%s1 + $0x10] sm:$0xf]
  %v32 = vld [vmem:[%s1 + $0x14] sm:$0xf]
  %v33 = vld [vmem:[%s1 + $0x18] sm:$0xf]
  %v34 = vld [vmem:[%s1 + $0x1c] sm:$0xf]
  %vm35 = vsmask.f32 3328
  %vm36 = vsmask.f32 7440
  %vm37 = vmor %vm35, %vm36
  %v39 = vshrl.u32 %v21, 16
  %v41 = vrot.slane %v39, 4
  %v42 = vshll.u32 %v21, 16
  %v44 = vrot.slane %v42, 5
  %v45 = vor.u32 %v41, %v44
  %v46 = vrot.slane %v45, 4
  %v48 = vshll.u32 %v22, 16
  %v50 = vrot.slane %v48, 5
  %v51 = vsel %vm37, %v46, %v50
  %v52 = vshrl.u32 %v22, 16
  %v54 = vrot.slane %v52, 4
  %v55 = vor.u32 %v54, %v50
  %v56 = vrot.slane %v55, 4
  %v58 = vshll.u32 %v23, 16
  %v60 = vrot.slane %v58, 5
  %v61 = vsel %vm37, %v56, %v60
  %v63 = vshrl.u32 %v24, 16
  %v65 = vrot.slane %v63, 4
  %v66 = vshll.u32 %v24, 16
  %v68 = vrot.slane %v66, 5
  %v69 = vor.u32 %v65, %v68
  %v70 = vrot.slane %v69, 4
  %v72 = vshll.u32 %v25, 16
  %v74 = vrot.slane %v72, 5
  %v75 = vsel %vm37, %v70, %v74
  %v76 = vshrl.u32 %v25, 16
  %v78 = vrot.slane %v76, 4
  %v79 = vor.u32 %v78, %v74
  %v80 = vrot.slane %v79, 4
  %v82 = vshll.u32 %v26, 16
  %v84 = vrot.slane %v82, 5
  %v85 = vsel %vm37, %v80, %v84
  %s86 = scalar_lea.vmem %s1, 32
  %v87 = vld [vmem:[%s86] sm:$0xf]
  %v88 = vld [vmem:[%s86 + $0x4] sm:$0xf]
  %v89 = vld [vmem:[%s86 + $0x8] sm:$0xf]
  %v90 = vld [vmem:[%s86 + $0xc] sm:$0xf]
  %v91 = vld [vmem:[%s86 + $0x10] sm:$0xf]
  %v92 = vld [vmem:[%s86 + $0x14] sm:$0xf]
  %v93 = vld [vmem:[%s86 + $0x18] sm:$0xf]
  %v94 = vld [vmem:[%s86 + $0x1c] sm:$0xf]
  %v95 = vunpack.c.l.b16 %v51
  %v96 = vunpack.c.l.b16 %v61
  %v97 = vunpack.c.l.b16 %v75
  %v98 = vunpack.c.l.b16 %v85
  %v99 = vpack.c.b16 %v96, %v95
  %v100 = vpack.c.b16 %v98, %v97
  %v109 = vunpack.c.l.b16 %v87
  %v110 = vunpack.c.l.b16 %v88
  %v111 = vunpack.c.l.b16 %v89
  %v112 = vunpack.c.l.b16 %v90
  %v113 = vunpack.c.l.b16 %v91
  %v114 = vunpack.c.l.b16 %v92
  %v115 = vunpack.c.l.b16 %v93
  %v116 = vunpack.c.l.b16 %v94
  %v117 = vpack.c.b16 %v110, %v109
  %v118 = vpack.c.b16 %v112, %v111
  %v119 = vpack.c.b16 %v114, %v113
  %v120 = vpack.c.b16 %v116, %v115
  %vm125 = vcmask 523264
  %v127 = vsel %vm125, %v99, 0
  %v130 = vsel %vm125, %v100, 0
  %132 = vmatprep.subr.bf16.mxu0 0
  %133 = vmatpush1.bf16.msra.mxu0 %v117
  %134 = vmatprep.subr.bf16.mxu0 0
  %135 = vmatpush1.bf16.msra.mxu0 %v118
  %136 = vmatprep.subr.bf16.mxu0 0
  %137 = vmatpush1.bf16.msra.mxu0 %v119
  %138 = vmatprep.subr.bf16.mxu0 0
  %139 = vmatpush1.bf16.msra.mxu0 %v120
  %140 = vmatprep.subr.bf16.mxu0 0
  %141 = vmatpush1.bf16.msra.mxu0 0
  %142 = vmatprep.subr.bf16.mxu0 0
  %143 = vmatpush1.bf16.msra.mxu0 0
  %144 = vmatprep.subr.bf16.mxu0 0
  %145 = vmatpush1.bf16.msra.mxu0 0
  %146 = vmatprep.subr.bf16.mxu0 0
  %147 = vmatpush1.bf16.msra.mxu0 0
  %148 = vmatprep.subr.bf16.mxu0 0
  %149 = vmatpush1.bf16.msra.mxu0 0
  %150 = vmatprep.subr.bf16.mxu0 0
  %151 = vmatpush1.bf16.msra.mxu0 0
  %152 = vmatprep.subr.bf16.mxu0 0
  %153 = vmatpush1.bf16.msra.mxu0 0
  %154 = vmatprep.subr.bf16.mxu0 0
  %155 = vmatpush1.bf16.msra.mxu0 0
  %156 = vmatprep.subr.bf16.mxu0 0
  %157 = vmatpush1.bf16.msra.mxu0 0
  %158 = vmatprep.subr.bf16.mxu0 0
  %159 = vmatpush1.bf16.msra.mxu0 0
  %160 = vmatprep.subr.bf16.mxu0 0
  %161 = vmatpush1.bf16.msra.mxu0 0
  %162 = vmatprep.subr.bf16.mxu0 0
  %163 = vmatpush1.bf16.msra.mxu0 0
  %164 = vmatprep.mubr.bf16.mxu0 0
  %165 = vmatmul.mubr.bf16.gmra.mrb[0].mxu0 %v127
  %v166 = vpop.f32.mrb[0].mxu0
  %v167 = vadd.f32 0.0, %v166
  %v168 = vpop.f32.mrb[0].mxu0
  %v169 = vpop.f32.mrb[0].mxu0
  %v170 = vadd.f32 0.0, %v169
  %v171 = vpop.f32.mrb[0].mxu0
  %172 = vmatprep.mubr.bf16.mxu0 0
  %173 = vmatmul.mubr.bf16.gmra.mrb[0].mxu0 %v130
  %v174 = vpop.f32.mrb[0].mxu0
  %v175 = vadd.f32 0.0, %v174
  %v176 = vpop.f32.mrb[0].mxu0
  %v177 = vpop.f32.mrb[0].mxu0
  %v178 = vadd.f32 0.0, %v177
  %v179 = vpop.f32.mrb[0].mxu0
  %180 = vdwg.mxu0
  %v185 = vunpack.c.l.b16 %v21
  %v186 = vunpack.c.l.b16 %v22
  %v187 = vunpack.c.l.b16 %v24
  %v188 = vunpack.c.l.b16 %v25
  %v189 = vpack.c.b16 %v186, %v185
  %v190 = vpack.c.b16 %v188, %v187
  %v199 = vunpack.c.l.b16 %v27
  %v200 = vunpack.c.l.b16 %v28
  %v201 = vunpack.c.l.b16 %v29
  %v202 = vunpack.c.l.b16 %v30
  %v203 = vunpack.c.l.b16 %v31
  %v204 = vunpack.c.l.b16 %v32
  %v205 = vunpack.c.l.b16 %v33
  %v206 = vunpack.c.l.b16 %v34
  %v207 = vpack.c.b16 %v200, %v199
  %v208 = vpack.c.b16 %v202, %v201
  %v209 = vpack.c.b16 %v204, %v203
  %v210 = vpack.c.b16 %v206, %v205
  %v216 = vsel %vm125, %v189, 0
  %v219 = vsel %vm125, %v190, 0
  %221 = vmatprep.subr.bf16.mxu0 0
  %222 = vmatpush1.bf16.msra.mxu0 %v207
  %223 = vmatprep.subr.bf16.mxu0 0
  %224 = vmatpush1.bf16.msra.mxu0 %v208
  %225 = vmatprep.subr.bf16.mxu0 0
  %226 = vmatpush1.bf16.msra.mxu0 %v209
  %227 = vmatprep.subr.bf16.mxu0 0
  %228 = vmatpush1.bf16.msra.mxu0 %v210
  %229 = vmatprep.subr.bf16.mxu0 0
  %230 = vmatpush1.bf16.msra.mxu0 0
  %231 = vmatprep.subr.bf16.mxu0 0
  %232 = vmatpush1.bf16.msra.mxu0 0
  %233 = vmatprep.subr.bf16.mxu0 0
  %234 = vmatpush1.bf16.msra.mxu0 0
  %235 = vmatprep.subr.bf16.mxu0 0
  %236 = vmatpush1.bf16.msra.mxu0 0
  %237 = vmatprep.subr.bf16.mxu0 0
  %238 = vmatpush1.bf16.msra.mxu0 0
  %239 = vmatprep.subr.bf16.mxu0 0
  %240 = vmatpush1.bf16.msra.mxu0 0
  %241 = vmatprep.subr.bf16.mxu0 0
  %242 = vmatpush1.bf16.msra.mxu0 0
  %243 = vmatprep.subr.bf16.mxu0 0
  %244 = vmatpush1.bf16.msra.mxu0 0
  %245 = vmatprep.subr.bf16.mxu0 0
  %246 = vmatpush1.bf16.msra.mxu0 0
  %247 = vmatprep.subr.bf16.mxu0 0
  %248 = vmatpush1.bf16.msra.mxu0 0
  %249 = vmatprep.subr.bf16.mxu0 0
  %250 = vmatpush1.bf16.msra.mxu0 0
  %251 = vmatprep.subr.bf16.mxu0 0
  %252 = vmatpush1.bf16.msra.mxu0 0
  %253 = vmatprep.mubr.bf16.mxu0 0
  %254 = vmatmul.mubr.bf16.gmra.mrb[0].mxu0 %v216
  %v255 = vpop.f32.mrb[0].mxu0
  %v256 = vadd.f32 %v167, %v255
  %v257 = vpop.f32.mrb[0].mxu0
  %v258 = vpop.f32.mrb[0].mxu0
  %v259 = vadd.f32 %v170, %v258
  %v260 = vpop.f32.mrb[0].mxu0
  %261 = vmatprep.mubr.bf16.mxu0 0
  %262 = vmatmul.mubr.bf16.gmra.mrb[0].mxu0 %v219
  %v263 = vpop.f32.mrb[0].mxu0
  %v264 = vadd.f32 %v175, %v263
  %v265 = vpop.f32.mrb[0].mxu0
  %v266 = vpop.f32.mrb[0].mxu0
  %v267 = vadd.f32 %v178, %v266
  %v268 = vpop.f32.mrb[0].mxu0
  %269 = vdwg.mxu0
  %vm272 = vcmask 1042432
  %vm273 = vcmask 1046532
  %vm274 = vmor %vm272, %vm273
  %v275 = vrot.slane %v21, 5
  %v276 = vrot.slane %v275, 4
  %v277 = vrot.slane %v22, 5
  %v278 = vsel %vm274, %v276, %v277
  %v279 = vrot.slane %v277, 4
  %v280 = vrot.slane %v23, 5
  %v281 = vsel %vm274, %v279, %v280
  %v282 = vrot.slane %v24, 5
  %v283 = vrot.slane %v282, 4
  %v284 = vrot.slane %v25, 5
  %v285 = vsel %vm274, %v283, %v284
  %v286 = vrot.slane %v284, 4
  %v287 = vrot.slane %v26, 5
  %v288 = vsel %vm274, %v286, %v287
  %s289 = scalar_lea.vmem %s1, 64
  %v290 = vld [vmem:[%s289] sm:$0xf]
  %v291 = vld [vmem:[%s289 + $0x4] sm:$0xf]
  %v292 = vld [vmem:[%s289 + $0x8] sm:$0xf]
  %v293 = vld [vmem:[%s289 + $0xc] sm:$0xf]
  %v294 = vld [vmem:[%s289 + $0x10] sm:$0xf]
  %v295 = vld [vmem:[%s289 + $0x14] sm:$0xf]
  %v296 = vld [vmem:[%s289 + $0x18] sm:$0xf]
  %v297 = vld [vmem:[%s289 + $0x1c] sm:$0xf]
  %v298 = vunpack.c.l.b16 %v278
  %v299 = vunpack.c.l.b16 %v281
  %v300 = vunpack.c.l.b16 %v285
  %v301 = vunpack.c.l.b16 %v288
  %v302 = vpack.c.b16 %v299, %v298
  %v303 = vpack.c.b16 %v301, %v300
  %v312 = vunpack.c.l.b16 %v290
  %v313 = vunpack.c.l.b16 %v291
  %v314 = vunpack.c.l.b16 %v292
  %v315 = vunpack.c.l.b16 %v293
  %v316 = vunpack.c.l.b16 %v294
  %v317 = vunpack.c.l.b16 %v295
  %v318 = vunpack.c.l.b16 %v296
  %v319 = vunpack.c.l.b16 %v297
  %v320 = vpack.c.b16 %v313, %v312
  %v321 = vpack.c.b16 %v315, %v314
  %v322 = vpack.c.b16 %v317, %v316
  %v323 = vpack.c.b16 %v319, %v318
  %v329 = vsel %vm125, %v302, 0
  %v332 = vsel %vm125, %v303, 0
  %334 = vmatprep.subr.bf16.mxu0 0
  %335 = vmatpush1.bf16.msra.mxu0 %v320
  %336 = vmatprep.subr.bf16.mxu0 0
  %337 = vmatpush1.bf16.msra.mxu0 %v321
  %338 = vmatprep.subr.bf16.mxu0 0
  %339 = vmatpush1.bf16.msra.mxu0 %v322
  %340 = vmatprep.subr.bf16.mxu0 0
  %341 = vmatpush1.bf16.msra.mxu0 %v323
  %342 = vmatprep.subr.bf16.mxu0 0
  %343 = vmatpush1.bf16.msra.mxu0 0
  %344 = vmatprep.subr.bf16.mxu0 0
  %345 = vmatpush1.bf16.msra.mxu0 0
  %346 = vmatprep.subr.bf16.mxu0 0
  %347 = vmatpush1.bf16.msra.mxu0 0
  %348 = vmatprep.subr.bf16.mxu0 0
  %349 = vmatpush1.bf16.msra.mxu0 0
  %350 = vmatprep.subr.bf16.mxu0 0
  %351 = vmatpush1.bf16.msra.mxu0 0
  %352 = vmatprep.subr.bf16.mxu0 0
  %353 = vmatpush1.bf16.msra.mxu0 0
  %354 = vmatprep.subr.bf16.mxu0 0
  %355 = vmatpush1.bf16.msra.mxu0 0
  %356 = vmatprep.subr.bf16.mxu0 0
  %357 = vmatpush1.bf16.msra.mxu0 0
  %358 = vmatprep.subr.bf16.mxu0 0
  %359 = vmatpush1.bf16.msra.mxu0 0
  %360 = vmatprep.subr.bf16.mxu0 0
  %361 = vmatpush1.bf16.msra.mxu0 0
  %362 = vmatprep.subr.bf16.mxu0 0
  %363 = vmatpush1.bf16.msra.mxu0 0
  %364 = vmatprep.subr.bf16.mxu0 0
  %365 = vmatpush1.bf16.msra.mxu0 0
  %366 = vmatprep.mubr.bf16.mxu0 0
  %367 = vmatmul.mubr.bf16.gmra.mrb[0].mxu0 %v329
  %v368 = vpop.f32.mrb[0].mxu0
  %v369 = vadd.f32 0.0, %v368
  %v370 = vpop.f32.mrb[0].mxu0
  %v371 = vpop.f32.mrb[0].mxu0
  %v372 = vadd.f32 0.0, %v371
  %v373 = vpop.f32.mrb[0].mxu0
  %374 = vmatprep.mubr.bf16.mxu0 0
  %375 = vmatmul.mubr.bf16.gmra.mrb[0].mxu0 %v332
  %v376 = vpop.f32.mrb[0].mxu0
  %v377 = vadd.f32 0.0, %v376
  %v378 = vpop.f32.mrb[0].mxu0
  %v379 = vpop.f32.mrb[0].mxu0
  %v380 = vadd.f32 0.0, %v379
  %v381 = vpop.f32.mrb[0].mxu0
  %382 = vdwg.mxu0
  %v383 = vadd.f32 %v256, %v369
  %v384 = vadd.f32 %v259, %v372
  %v385 = vadd.f32 %v264, %v377
  %v386 = vadd.f32 %v267, %v380
  %s387 = smul.u32 0, 2
  %s388 = smul.u32 %s387, 16
  %s389 = scalar_lea.vmem [#allocation2], %s388
  %390 = vst [vmem:[%s389] sm:$0xff] %v383
  %391 = vst [vmem:[%s389 + $0x8] sm:$0xff] %v384
  %392 = vst [vmem:[%s389 + $0x10] sm:$0xff] %v385
  %393 = vst [vmem:[%s389 + $0x18] sm:$0xff] %v386
  %v394 = vadd.f32 %v383, %v384
  %v395 = vadd.f32 %v394, %v385
  %v396 = vadd.f32 %v395, %v386
  %v397 = vrot.slane %v396, 4
  %v398 = vadd.f32 %v396, %v397
  %v399 = vrot.slane %v398, 2
  %v400 = vadd.f32 %v398, %v399
  %v401 = vrot.slane %v400, 1
  %v402 = vadd.f32 %v400, %v401
  %v403 = vmul.f32 %v383, %v383
  %v404 = vmul.f32 %v384, %v384
  %v405 = vmul.f32 %v385, %v385
  %v406 = vmul.f32 %v386, %v386
  %v407 = vadd.f32 %v403, %v404
  %v408 = vadd.f32 %v407, %v405
  %v409 = vadd.f32 %v408, %v406
  %v410 = vrot.slane %v409, 4
  %v411 = vadd.f32 %v409, %v410
  %v412 = vrot.slane %v411, 2
  %v413 = vadd.f32 %v411, %v412
  %v414 = vrot.slane %v413, 1
  %v415 = vadd.f32 %v413, %v414
  %p416 = scmp.eq.s32.totalorder 0, 0
  // Predicated region
  $region22: #{_lambda_.2} parent=0 // pred_check
    %p417 = pneg %p416
  $region23: #{_lambda_.2} parent=0 // pred_check_branch
    %419 = sbr.rel (%p417) target = $region25
  $region24: #{_lambda_.2} parent=0 // pred_region
    %420 = vst [vmem:[#allocation3] sm:$0x1] %v402
    %421 = vst [vmem:[#allocation4] sm:$0x1] %v415
  $region25: #{_lambda_.2} parent=0 // pred_fallthru
    _
  %p422 = scmp.gt.s32.totalorder 0, 0
  // Predicated region
  $region26: #{_lambda_.2} parent=0 // pred_check
    %p423 = pneg %p422
  $region27: #{_lambda_.2} parent=0 // pred_check_branch
    %425 = sbr.rel (%p423) target = $region29
  $region28: #{_lambda_.2} parent=0 // pred_region
    %v426 = vld [vmem:[#allocation3] sm:$0x1]
    %v427 = vadd.f32 %v426, %v402
    %428 = vst [vmem:[#allocation3] sm:$0x1] %v427
    %v429 = vld [vmem:[#allocation4] sm:$0x1]
    %v430 = vadd.f32 %v429, %v415
    %431 = vst [vmem:[#allocation4] sm:$0x1] %v430
  $region29: #{_lambda_.2} parent=0 // pred_fallthru
    _
  // Predicated region
  $region30: #{_lambda_.2} parent=0 // pred_check
    %p432 = pneg %p416
  $region31: #{_lambda_.2} parent=0 // pred_check_branch
    %434 = sbr.rel (%p432) target = $region33
  $region32: #{_lambda_.2} parent=0 // pred_region
    %v435 = vld [vmem:[#allocation3] sm:$0x1]
    %v436 = vld [vmem:[%s2] sm:$0xff]
    %v437 = vld [vmem:[%s2 + $0x8] sm:$0xff]
    %v438 = vld [vmem:[%s2 + $0x10] sm:$0xff]
    %v439 = vld [vmem:[%s2 + $0x18] sm:$0xff]
    %v440 = vld [vmem:[%s2 + $0x20] sm:$0xff]
    %v441 = vld [vmem:[%s2 + $0x28] sm:$0xff]
    %v442 = vld [vmem:[%s2 + $0x30] sm:$0xff]
    %v443 = vld [vmem:[%s2 + $0x38] sm:$0xff]
    %v444 = vld [vmem:[%s2 + $0x40] sm:$0xff]
    %v445 = vld [vmem:[%s2 + $0x48] sm:$0xff]
    %v446 = vld [vmem:[%s2 + $0x50] sm:$0xff]
    %v447 = vld [vmem:[%s2 + $0x58] sm:$0xff]
    %v448 = vld [vmem:[%s2 + $0x60] sm:$0xff]
    %v449 = vld [vmem:[%s2 + $0x68] sm:$0xff]
    %v450 = vld [vmem:[%s2 + $0x70] sm:$0xff]
    %v451 = vld [vmem:[%s2 + $0x78] sm:$0xff]
    %452 = vmatprep.subr.mxu0 0.0
    %453 = vmatpush1.msra.mxu0 %v436
    %454 = vmatprep.subr.mxu0 0.0
    %455 = vmatpush1.msra.mxu0 %v437
    %456 = vmatprep.subr.mxu0 0.0
    %457 = vmatpush1.msra.mxu0 %v438
    %458 = vmatprep.subr.mxu0 0.0
    %459 = vmatpush1.msra.mxu0 %v439
    %460 = vmatprep.subr.mxu0 0.0
    %461 = vmatpush1.msra.mxu0 %v440
    %462 = vmatprep.subr.mxu0 0.0
    %463 = vmatpush1.msra.mxu0 %v441
    %464 = vmatprep.subr.mxu0 0.0
    %465 = vmatpush1.msra.mxu0 %v442
    %466 = vmatprep.subr.mxu0 0.0
    %467 = vmatpush1.msra.mxu0 %v443
    %468 = vmatprep.subr.mxu0 0.0
    %469 = vmatpush1.msra.mxu0 %v444
    %470 = vmatprep.subr.mxu0 0.0
    %471 = vmatpush1.msra.mxu0 %v445
    %472 = vmatprep.subr.mxu0 0.0
    %473 = vmatpush1.msra.mxu0 %v446
    %474 = vmatprep.subr.mxu0 0.0
    %475 = vmatpush1.msra.mxu0 %v447
    %476 = vmatprep.subr.mxu0 0.0
    %477 = vmatpush1.msra.mxu0 %v448
    %478 = vmatprep.subr.mxu0 0.0
    %479 = vmatpush1.msra.mxu0 %v449
    %480 = vmatprep.subr.mxu0 0.0
    %481 = vmatpush1.msra.mxu0 %v450
    %482 = vmatprep.subr.mxu0 0.0
    %483 = vmatpush1.msra.mxu0 %v451
    %484 = vmatprep.subr.mxu0 0.0
    %485 = vmatpush1.msra.mxu0 0.0
    %486 = vmatprep.subr.mxu0 0.0
    %487 = vmatpush1.msra.mxu0 0.0
    %488 = vmatprep.subr.mxu0 0.0
    %489 = vmatpush1.msra.mxu0 0.0
    %490 = vmatprep.subr.mxu0 0.0
    %491 = vmatpush1.msra.mxu0 0.0
    %492 = vmatprep.subr.mxu0 0.0
    %493 = vmatpush1.msra.mxu0 0.0
    %494 = vmatprep.subr.mxu0 0.0
    %495 = vmatpush1.msra.mxu0 0.0
    %496 = vmatprep.subr.mxu0 0.0
    %497 = vmatpush1.msra.mxu0 0.0
    %498 = vmatprep.subr.mxu0 0.0
    %499 = vmatpush1.msra.mxu0 0.0
    %500 = vmatprep.subr.mxu0 0.0
    %501 = vmatpush1.msra.mxu0 0.0
    %502 = vmatprep.subr.mxu0 0.0
    %503 = vmatpush1.msra.mxu0 0.0
    %504 = vmatprep.subr.mxu0 0.0
    %505 = vmatpush1.msra.mxu0 0.0
    %506 = vmatprep.subr.mxu0 0.0
    %507 = vmatpush1.msra.mxu0 0.0
    %508 = vmatprep.subr.mxu0 0.0
    %509 = vmatpush1.msra.mxu0 0.0
    %510 = vmatprep.subr.mxu0 0.0
    %511 = vmatpush1.msra.mxu0 0.0
    %512 = vmatprep.subr.mxu0 0.0
    %513 = vmatpush1.msra.mxu0 0.0
    %514 = vmatprep.subr.mxu0 0.0
    %515 = vmatpush1.msra.mxu0 0.0
    %516 = vmatprep.mubr.f32.mxu0 0.0
    %517 = vmatmul.mubr.f32.gmra.mrb[0].mxu0 %v435
    %v518 = vpop.f32.mrb[0].mxu0
    %v519 = vadd.f32 0.0, %v518
    %v520 = vpop.f32.mrb[0].mxu0
    %521 = vdwg.mxu0
    %v522 = vld [vmem:[#allocation4] sm:$0x1]
    %523 = vmatprep.subr.mxu0 0.0
    %524 = vmatpush1.msra.mxu0 %v436
    %525 = vmatprep.subr.mxu0 0.0
    %526 = vmatpush1.msra.mxu0 %v437
    %527 = vmatprep.subr.mxu0 0.0
    %528 = vmatpush1.msra.mxu0 %v438
    %529 = vmatprep.subr.mxu0 0.0
    %530 = vmatpush1.msra.mxu0 %v439
    %531 = vmatprep.subr.mxu0 0.0
    %532 = vmatpush1.msra.mxu0 %v440
    %533 = vmatprep.subr.mxu0 0.0
    %534 = vmatpush1.msra.mxu0 %v441
    %535 = vmatprep.subr.mxu0 0.0
    %536 = vmatpush1.msra.mxu0 %v442
    %537 = vmatprep.subr.mxu0 0.0
    %538 = vmatpush1.msra.mxu0 %v443
    %539 = vmatprep.subr.mxu0 0.0
    %540 = vmatpush1.msra.mxu0 %v444
    %541 = vmatprep.subr.mxu0 0.0
    %542 = vmatpush1.msra.mxu0 %v445
    %543 = vmatprep.subr.mxu0 0.0
    %544 = vmatpush1.msra.mxu0 %v446
    %545 = vmatprep.subr.mxu0 0.0
    %546 = vmatpush1.msra.mxu0 %v447
    %547 = vmatprep.subr.mxu0 0.0
    %548 = vmatpush1.msra.mxu0 %v448
    %549 = vmatprep.subr.mxu0 0.0
    %550 = vmatpush1.msra.mxu0 %v449
    %551 = vmatprep.subr.mxu0 0.0
    %552 = vmatpush1.msra.mxu0 %v450
    %553 = vmatprep.subr.mxu0 0.0
    %554 = vmatpush1.msra.mxu0 %v451
    %555 = vmatprep.subr.mxu0 0.0
    %556 = vmatpush1.msra.mxu0 0.0
    %557 = vmatprep.subr.mxu0 0.0
    %558 = vmatpush1.msra.mxu0 0.0
    %559 = vmatprep.subr.mxu0 0.0
    %560 = vmatpush1.msra.mxu0 0.0
    %561 = vmatprep.subr.mxu0 0.0
    %562 = vmatpush1.msra.mxu0 0.0
    %563 = vmatprep.subr.mxu0 0.0
    %564 = vmatpush1.msra.mxu0 0.0
    %565 = vmatprep.subr.mxu0 0.0
    %566 = vmatpush1.msra.mxu0 0.0
    %567 = vmatprep.subr.mxu0 0.0
    %568 = vmatpush1.msra.mxu0 0.0
    %569 = vmatprep.subr.mxu0 0.0
    %570 = vmatpush1.msra.mxu0 0.0
    %571 = vmatprep.subr.mxu0 0.0
    %572 = vmatpush1.msra.mxu0 0.0
    %573 = vmatprep.subr.mxu0 0.0
    %574 = vmatpush1.msra.mxu0 0.0
    %575 = vmatprep.subr.mxu0 0.0
    %576 = vmatpush1.msra.mxu0 0.0
    %577 = vmatprep.subr.mxu0 0.0
    %578 = vmatpush1.msra.mxu0 0.0
    %579 = vmatprep.subr.mxu0 0.0
    %580 = vmatpush1.msra.mxu0 0.0
    %581 = vmatprep.subr.mxu0 0.0
    %582 = vmatpush1.msra.mxu0 0.0
    %583 = vmatprep.subr.mxu0 0.0
    %584 = vmatpush1.msra.mxu0 0.0
    %585 = vmatprep.subr.mxu0 0.0
    %586 = vmatpush1.msra.mxu0 0.0
    %587 = vmatprep.mubr.f32.mxu0 0.0
    %588 = vmatmul.mubr.f32.gmra.mrb[0].mxu0 %v522
    %v589 = vpop.f32.mrb[0].mxu0
    %v590 = vadd.f32 0.0, %v589
    %v591 = vpop.f32.mrb[0].mxu0
    %592 = vdwg.mxu0
    %v593 = vmul.f32 %v519, 0.001953125
    %v594 = vmul.f32 %v590, 0.001953125
    %v595 = vmul.f32 %v593, %v593
    %v596 = vsub.f32 %v594, %v595
    %v597 = vadd.f32 %v596, 1e-05
    %v598 = vrsqrt.pop %v597
    %v599 = vld [vmem:[%s3] sm:$0x1]
    %v600 = vmul.f32 %v599, %v598
    %v601 = vld [vmem:[%s4] sm:$0x1]
    %v602 = vmul.f32 %v593, %v600
    %v603 = vsub.f32 %v601, %v602
    %v604 = vld [vmem:[#allocation2] sm:$0xff]
    %v605 = vld [vmem:[#allocation2 + $0x8] sm:$0xff]
    %v606 = vld [vmem:[#allocation2 + $0x10] sm:$0xff]
    %v607 = vld [vmem:[#allocation2 + $0x18] sm:$0xff]
    %v609 = vlaneseq
    %v610 = vshrl.u32 %v609, 7
    %v611 = vsub.s32 0, %v610
    %v612 = vrot.slane %v600, %v611
    %v614 = vmul.f32 %v604, %v612
    %v615 = vmul.f32 %v605, %v612
    %v616 = vmul.f32 %v606, %v612
    %v617 = vmul.f32 %v607, %v612
    %v619 = vlaneseq
    %v620 = vshrl.u32 %v619, 7
    %v621 = vsub.s32 0, %v620
    %v622 = vrot.slane %v603, %v621
    %v624 = vadd.f32 %v614, %v622
    %v625 = vadd.f32 %v615, %v622
    %v626 = vadd.f32 %v616, %v622
    %v627 = vadd.f32 %v617, %v622
    %v628 = vmax.f32 %v624, 0.0
    %v629 = vmax.f32 %v625, 0.0
    %v630 = vmax.f32 %v626, 0.0
    %v631 = vmax.f32 %v627, 0.0
    %v632 = vpack.c.bf16 %v629, %v628
    %v633 = vpack.c.bf16 %v631, %v630
    %v636 = vunpack.c.l.b16 %v632
    %v637 = vunpack.c.h.b16 %v632
    %v638 = vunpack.c.l.b16 %v633
    %v639 = vunpack.c.h.b16 %v633
    %v640 = vpack.c.b16 %v636, %v636
    %v641 = vpack.c.b16 %v637, %v637
    %v642 = vpack.c.b16 %v638, %v638
    %v643 = vpack.c.b16 %v639, %v639
    %648 = vst [vmem:[%s5] sm:$0xf] %v640
    %649 = vst [vmem:[%s5 + $0x4] sm:$0xf] %v641
    %650 = vst [vmem:[%s5 + $0x8] sm:$0xf] %v642
    %651 = vst [vmem:[%s5 + $0xc] sm:$0xf] %v643
  $region33: #{_lambda_.2} parent=0 // pred_fallthru
    _
  // Predicated region
  $region34: #{_lambda_.2} parent=0 // pred_check
    _
  $region35: #{_lambda_.2} parent=0 // pred_check_branch
    %653 = sbr.rel (0) target = $region37
  $region36: #{_lambda_.2} parent=0 // pred_region
    _
  $region37: #{_lambda_.2} parent=0 // pred_fallthru
    _
  // Predicated region
  $region38: #{_lambda_.2} parent=0 // pred_check
    _
  $region39: #{_lambda_.2} parent=0 // pred_check_branch
    %655 = sbr.rel (0) target = $region41
  $region40: #{_lambda_.2} parent=0 // pred_region
    _
  $region41: #{_lambda_.2} parent=0 // pred_fallthru
    _

// kernel: _lambda_.3
$region0: #{_lambda_.3}
  #allocation0 [shape = 'u32[]', space=smem, size = 0x4, offset = 0x4, fixed_abs, tag = 'smem constant byte address 0x4 - core index']
  #allocation1 [shape = 'u32[144,128]{1,0:T(1,128)}', space=vmem, size = 0x12000, scoped, tag = 'internal scratch']
  #allocation2 [shape = 'f32[2,16,128]{2,1,0:T(8,128)}', space=vmem, size = 0x4000, scoped, tag = 'scratch operand']
  #allocation3 [shape = 'f32[1,128]{1,0:T(1,128)}', space=vmem, size = 0x200, scoped, tag = 'scratch operand']
  #allocation4 [shape = 'f32[1,128]{1,0:T(1,128)}', space=vmem, size = 0x200, scoped, tag = 'scratch operand']
  %s0 = inlined_call_operand.vmem [shape: bf16[2,18,128], index: 0, kind: input, shape index: {}]
  %s1 = inlined_call_operand.vmem [shape: bf16[3,128,128], index: 1, kind: input, shape index: {}]
  %s2 = inlined_call_operand.vmem [shape: f32[128,128], index: 2, kind: input, shape index: {}]
  %s3 = inlined_call_operand.vmem [shape: f32[1,128], index: 3, kind: input, shape index: {}]
  %s4 = inlined_call_operand.vmem [shape: f32[1,128], index: 4, kind: input, shape index: {}]
  %s5 = inlined_call_operand.vmem [shape: bf16[2,16,128], index: 5, kind: output, shape index: {}]
  %s6 = sld [smem:[#allocation0]]
  $region42: #{_lambda_.3} parent=0
    _
  %s8 = ssub.s32 1, %s6
  %s9 = scalar_select 0, %s8, %s6
  // Predicated region
  $region2: #{_lambda_.3} parent=0 // pred_check
    _
  $region3: #{_lambda_.3} parent=0 // pred_check_branch
    %11 = sbr.rel (0) target = $region5
  $region4: #{_lambda_.3} parent=0 // pred_region
    _
  $region5: #{_lambda_.3} parent=0 // pred_fallthru
    _
  // Predicated region
  $region6: #{_lambda_.3} parent=0 // pred_check
    _
  $region7: #{_lambda_.3} parent=0 // pred_check_branch
    %13 = sbr.rel (0) target = $region9
  $region8: #{_lambda_.3} parent=0 // pred_region
    _
  $region9: #{_lambda_.3} parent=0 // pred_fallthru
    _
  // Predicated region
  $region10: #{_lambda_.3} parent=0 // pred_check
    _
  $region11: #{_lambda_.3} parent=0 // pred_check_branch
    %15 = sbr.rel (0) target = $region13
  $region12: #{_lambda_.3} parent=0 // pred_region
    _
  $region13: #{_lambda_.3} parent=0 // pred_fallthru
    _
  // Predicated region
  $region14: #{_lambda_.3} parent=0 // pred_check
    _
  $region15: #{_lambda_.3} parent=0 // pred_check_branch
    %17 = sbr.rel (0) target = $region17
  $region16: #{_lambda_.3} parent=0 // pred_region
    _
  $region17: #{_lambda_.3} parent=0 // pred_fallthru
    _
  // Predicated region
  $region18: #{_lambda_.3} parent=0 // pred_check
    _
  $region19: #{_lambda_.3} parent=0 // pred_check_branch
    %19 = sbr.rel (0) target = $region21
  $region20: #{_lambda_.3} parent=0 // pred_region
    _
  $region21: #{_lambda_.3} parent=0 // pred_fallthru
    _
  %v21 = vld [vmem:[%s0] sm:$0xf]
  %v22 = vld [vmem:[%s0 + $0x4] sm:$0xf]
  %v23 = vld [vmem:[%s0 + $0x8] sm:$0x1]
  %v24 = vld [vmem:[%s0 + $0xc] sm:$0xf]
  %v25 = vld [vmem:[%s0 + $0x10] sm:$0xf]
  %v26 = vld [vmem:[%s0 + $0x14] sm:$0x1]
  %v27 = vld [vmem:[%s1] sm:$0xf]
  %v28 = vld [vmem:[%s1 + $0x4] sm:$0xf]
  %v29 = vld [vmem:[%s1 + $0x8] sm:$0xf]
  %v30 = vld [vmem:[%s1 + $0xc] sm:$0xf]
  %v31 = vld [vmem:[%s1 + $0x10] sm:$0xf]
  %v32 = vld [vmem:[%s1 + $0x14] sm:$0xf]
  %v33 = vld [vmem:[%s1 + $0x18] sm:$0xf]
  %v34 = vld [vmem:[%s1 + $0x1c] sm:$0xf]
  %v35 = vld [vmem:[%s1 + $0x20] sm:$0xf]
  %v36 = vld [vmem:[%s1 + $0x24] sm:$0xf]
  %v37 = vld [vmem:[%s1 + $0x28] sm:$0xf]
  %v38 = vld [vmem:[%s1 + $0x2c] sm:$0xf]
  %v39 = vld [vmem:[%s1 + $0x30] sm:$0xf]
  %v40 = vld [vmem:[%s1 + $0x34] sm:$0xf]
  %v41 = vld [vmem:[%s1 + $0x38] sm:$0xf]
  %v42 = vld [vmem:[%s1 + $0x3c] sm:$0xf]
  %vm43 = vsmask.f32 3328
  %vm44 = vsmask.f32 7440
  %vm45 = vmor %vm43, %vm44
  %v47 = vshrl.u32 %v21, 16
  %v49 = vrot.slane %v47, 4
  %v50 = vshll.u32 %v21, 16
  %v52 = vrot.slane %v50, 5
  %v53 = vor.u32 %v49, %v52
  %v54 = vrot.slane %v53, 4
  %v56 = vshll.u32 %v22, 16
  %v58 = vrot.slane %v56, 5
  %v59 = vsel %vm45, %v54, %v58
  %v60 = vshrl.u32 %v22, 16
  %v62 = vrot.slane %v60, 4
  %v63 = vor.u32 %v62, %v58
  %v64 = vrot.slane %v63, 4
  %v66 = vshll.u32 %v23, 16
  %v68 = vrot.slane %v66, 5
  %v69 = vsel %vm45, %v64, %v68
  %v71 = vshrl.u32 %v24, 16
  %v73 = vrot.slane %v71, 4
  %v74 = vshll.u32 %v24, 16
  %v76 = vrot.slane %v74, 5
  %v77 = vor.u32 %v73, %v76
  %v78 = vrot.slane %v77, 4
  %v80 = vshll.u32 %v25, 16
  %v82 = vrot.slane %v80, 5
  %v83 = vsel %vm45, %v78, %v82
  %v84 = vshrl.u32 %v25, 16
  %v86 = vrot.slane %v84, 4
  %v87 = vor.u32 %v86, %v82
  %v88 = vrot.slane %v87, 4
  %v90 = vshll.u32 %v26, 16
  %v92 = vrot.slane %v90, 5
  %v93 = vsel %vm45, %v88, %v92
  %s94 = scalar_lea.vmem %s1, 64
  %v95 = vld [vmem:[%s94] sm:$0xf]
  %v96 = vld [vmem:[%s94 + $0x4] sm:$0xf]
  %v97 = vld [vmem:[%s94 + $0x8] sm:$0xf]
  %v98 = vld [vmem:[%s94 + $0xc] sm:$0xf]
  %v99 = vld [vmem:[%s94 + $0x10] sm:$0xf]
  %v100 = vld [vmem:[%s94 + $0x14] sm:$0xf]
  %v101 = vld [vmem:[%s94 + $0x18] sm:$0xf]
  %v102 = vld [vmem:[%s94 + $0x1c] sm:$0xf]
  %v103 = vld [vmem:[%s94 + $0x20] sm:$0xf]
  %v104 = vld [vmem:[%s94 + $0x24] sm:$0xf]
  %v105 = vld [vmem:[%s94 + $0x28] sm:$0xf]
  %v106 = vld [vmem:[%s94 + $0x2c] sm:$0xf]
  %v107 = vld [vmem:[%s94 + $0x30] sm:$0xf]
  %v108 = vld [vmem:[%s94 + $0x34] sm:$0xf]
  %v109 = vld [vmem:[%s94 + $0x38] sm:$0xf]
  %v110 = vld [vmem:[%s94 + $0x3c] sm:$0xf]
  %v111 = vunpack.c.l.b16 %v59
  %v112 = vunpack.c.l.b16 %v69
  %v113 = vunpack.c.l.b16 %v83
  %v114 = vunpack.c.l.b16 %v93
  %v115 = vpack.c.b16 %v112, %v111
  %v116 = vpack.c.b16 %v114, %v113
  %v135 = vunpack.c.l.b16 %v95
  %v136 = vunpack.c.l.b16 %v96
  %v137 = vunpack.c.l.b16 %v97
  %v138 = vunpack.c.l.b16 %v98
  %v139 = vunpack.c.l.b16 %v99
  %v140 = vunpack.c.l.b16 %v100
  %v141 = vunpack.c.l.b16 %v101
  %v142 = vunpack.c.l.b16 %v102
  %v143 = vunpack.c.l.b16 %v103
  %v144 = vunpack.c.l.b16 %v104
  %v145 = vunpack.c.l.b16 %v105
  %v146 = vunpack.c.l.b16 %v106
  %v147 = vunpack.c.l.b16 %v107
  %v148 = vunpack.c.l.b16 %v108
  %v149 = vunpack.c.l.b16 %v109
  %v150 = vunpack.c.l.b16 %v110
  %v151 = vpack.c.b16 %v136, %v135
  %v152 = vpack.c.b16 %v138, %v137
  %v153 = vpack.c.b16 %v140, %v139
  %v154 = vpack.c.b16 %v142, %v141
  %v155 = vpack.c.b16 %v144, %v143
  %v156 = vpack.c.b16 %v146, %v145
  %v157 = vpack.c.b16 %v148, %v147
  %v158 = vpack.c.b16 %v150, %v149
  %167 = vmatprep.subr.bf16.mxu0 0
  %168 = vmatpush1.bf16.msra.mxu0 %v151
  %169 = vmatprep.subr.bf16.mxu0 0
  %170 = vmatpush1.bf16.msra.mxu0 %v152
  %171 = vmatprep.subr.bf16.mxu0 0
  %172 = vmatpush1.bf16.msra.mxu0 %v153
  %173 = vmatprep.subr.bf16.mxu0 0
  %174 = vmatpush1.bf16.msra.mxu0 %v154
  %175 = vmatprep.subr.bf16.mxu0 0
  %176 = vmatpush1.bf16.msra.mxu0 %v155
  %177 = vmatprep.subr.bf16.mxu0 0
  %178 = vmatpush1.bf16.msra.mxu0 %v156
  %179 = vmatprep.subr.bf16.mxu0 0
  %180 = vmatpush1.bf16.msra.mxu0 %v157
  %181 = vmatprep.subr.bf16.mxu0 0
  %182 = vmatpush1.bf16.msra.mxu0 %v158
  %183 = vmatprep.subr.bf16.mxu0 0
  %184 = vmatpush1.bf16.msra.mxu0 0
  %185 = vmatprep.subr.bf16.mxu0 0
  %186 = vmatpush1.bf16.msra.mxu0 0
  %187 = vmatprep.subr.bf16.mxu0 0
  %188 = vmatpush1.bf16.msra.mxu0 0
  %189 = vmatprep.subr.bf16.mxu0 0
  %190 = vmatpush1.bf16.msra.mxu0 0
  %191 = vmatprep.subr.bf16.mxu0 0
  %192 = vmatpush1.bf16.msra.mxu0 0
  %193 = vmatprep.subr.bf16.mxu0 0
  %194 = vmatpush1.bf16.msra.mxu0 0
  %195 = vmatprep.subr.bf16.mxu0 0
  %196 = vmatpush1.bf16.msra.mxu0 0
  %197 = vmatprep.subr.bf16.mxu0 0
  %198 = vmatpush1.bf16.msra.mxu0 0
  %199 = vmatprep.mubr.bf16.mxu0 0
  %200 = vmatmul.mubr.bf16.gmra.mrb[0].mxu0 %v115
  %v201 = vpop.f32.mrb[0].mxu0
  %v202 = vadd.f32 0.0, %v201
  %v203 = vpop.f32.mrb[0].mxu0
  %v204 = vpop.f32.mrb[0].mxu0
  %v205 = vadd.f32 0.0, %v204
  %v206 = vpop.f32.mrb[0].mxu0
  %207 = vmatprep.mubr.bf16.mxu0 0
  %208 = vmatmul.mubr.bf16.gmra.mrb[0].mxu0 %v116
  %v209 = vpop.f32.mrb[0].mxu0
  %v210 = vadd.f32 0.0, %v209
  %v211 = vpop.f32.mrb[0].mxu0
  %v212 = vpop.f32.mrb[0].mxu0
  %v213 = vadd.f32 0.0, %v212
  %v214 = vpop.f32.mrb[0].mxu0
  %215 = vdwg.mxu0
  %v220 = vunpack.c.l.b16 %v21
  %v221 = vunpack.c.l.b16 %v22
  %v222 = vunpack.c.l.b16 %v24
  %v223 = vunpack.c.l.b16 %v25
  %v224 = vpack.c.b16 %v221, %v220
  %v225 = vpack.c.b16 %v223, %v222
  %v244 = vunpack.c.l.b16 %v27
  %v245 = vunpack.c.l.b16 %v28
  %v246 = vunpack.c.l.b16 %v29
  %v247 = vunpack.c.l.b16 %v30
  %v248 = vunpack.c.l.b16 %v31
  %v249 = vunpack.c.l.b16 %v32
  %v250 = vunpack.c.l.b16 %v33
  %v251 = vunpack.c.l.b16 %v34
  %v252 = vunpack.c.l.b16 %v35
  %v253 = vunpack.c.l.b16 %v36
  %v254 = vunpack.c.l.b16 %v37
  %v255 = vunpack.c.l.b16 %v38
  %v256 = vunpack.c.l.b16 %v39
  %v257 = vunpack.c.l.b16 %v40
  %v258 = vunpack.c.l.b16 %v41
  %v259 = vunpack.c.l.b16 %v42
  %v260 = vpack.c.b16 %v245, %v244
  %v261 = vpack.c.b16 %v247, %v246
  %v262 = vpack.c.b16 %v249, %v248
  %v263 = vpack.c.b16 %v251, %v250
  %v264 = vpack.c.b16 %v253, %v252
  %v265 = vpack.c.b16 %v255, %v254
  %v266 = vpack.c.b16 %v257, %v256
  %v267 = vpack.c.b16 %v259, %v258
  %276 = vmatprep.subr.bf16.mxu0 0
  %277 = vmatpush1.bf16.msra.mxu0 %v260
  %278 = vmatprep.subr.bf16.mxu0 0
  %279 = vmatpush1.bf16.msra.mxu0 %v261
  %280 = vmatprep.subr.bf16.mxu0 0
  %281 = vmatpush1.bf16.msra.mxu0 %v262
  %282 = vmatprep.subr.bf16.mxu0 0
  %283 = vmatpush1.bf16.msra.mxu0 %v263
  %284 = vmatprep.subr.bf16.mxu0 0
  %285 = vmatpush1.bf16.msra.mxu0 %v264
  %286 = vmatprep.subr.bf16.mxu0 0
  %287 = vmatpush1.bf16.msra.mxu0 %v265
  %288 = vmatprep.subr.bf16.mxu0 0
  %289 = vmatpush1.bf16.msra.mxu0 %v266
  %290 = vmatprep.subr.bf16.mxu0 0
  %291 = vmatpush1.bf16.msra.mxu0 %v267
  %292 = vmatprep.subr.bf16.mxu0 0
  %293 = vmatpush1.bf16.msra.mxu0 0
  %294 = vmatprep.subr.bf16.mxu0 0
  %295 = vmatpush1.bf16.msra.mxu0 0
  %296 = vmatprep.subr.bf16.mxu0 0
  %297 = vmatpush1.bf16.msra.mxu0 0
  %298 = vmatprep.subr.bf16.mxu0 0
  %299 = vmatpush1.bf16.msra.mxu0 0
  %300 = vmatprep.subr.bf16.mxu0 0
  %301 = vmatpush1.bf16.msra.mxu0 0
  %302 = vmatprep.subr.bf16.mxu0 0
  %303 = vmatpush1.bf16.msra.mxu0 0
  %304 = vmatprep.subr.bf16.mxu0 0
  %305 = vmatpush1.bf16.msra.mxu0 0
  %306 = vmatprep.subr.bf16.mxu0 0
  %307 = vmatpush1.bf16.msra.mxu0 0
  %308 = vmatprep.mubr.bf16.mxu0 0
  %309 = vmatmul.mubr.bf16.gmra.mrb[0].mxu0 %v224
  %v310 = vpop.f32.mrb[0].mxu0
  %v311 = vadd.f32 %v202, %v310
  %v312 = vpop.f32.mrb[0].mxu0
  %v313 = vpop.f32.mrb[0].mxu0
  %v314 = vadd.f32 %v205, %v313
  %v315 = vpop.f32.mrb[0].mxu0
  %316 = vmatprep.mubr.bf16.mxu0 0
  %317 = vmatmul.mubr.bf16.gmra.mrb[0].mxu0 %v225
  %v318 = vpop.f32.mrb[0].mxu0
  %v319 = vadd.f32 %v210, %v318
  %v320 = vpop.f32.mrb[0].mxu0
  %v321 = vpop.f32.mrb[0].mxu0
  %v322 = vadd.f32 %v213, %v321
  %v323 = vpop.f32.mrb[0].mxu0
  %324 = vdwg.mxu0
  %vm327 = vcmask 1042432
  %vm328 = vcmask 1046532
  %vm329 = vmor %vm327, %vm328
  %v330 = vrot.slane %v21, 5
  %v331 = vrot.slane %v330, 4
  %v332 = vrot.slane %v22, 5
  %v333 = vsel %vm329, %v331, %v332
  %v334 = vrot.slane %v332, 4
  %v335 = vrot.slane %v23, 5
  %v336 = vsel %vm329, %v334, %v335
  %v337 = vrot.slane %v24, 5
  %v338 = vrot.slane %v337, 4
  %v339 = vrot.slane %v25, 5
  %v340 = vsel %vm329, %v338, %v339
  %v341 = vrot.slane %v339, 4
  %v342 = vrot.slane %v26, 5
  %v343 = vsel %vm329, %v341, %v342
  %s344 = scalar_lea.vmem %s1, 128
  %v345 = vld [vmem:[%s344] sm:$0xf]
  %v346 = vld [vmem:[%s344 + $0x4] sm:$0xf]
  %v347 = vld [vmem:[%s344 + $0x8] sm:$0xf]
  %v348 = vld [vmem:[%s344 + $0xc] sm:$0xf]
  %v349 = vld [vmem:[%s344 + $0x10] sm:$0xf]
  %v350 = vld [vmem:[%s344 + $0x14] sm:$0xf]
  %v351 = vld [vmem:[%s344 + $0x18] sm:$0xf]
  %v352 = vld [vmem:[%s344 + $0x1c] sm:$0xf]
  %v353 = vld [vmem:[%s344 + $0x20] sm:$0xf]
  %v354 = vld [vmem:[%s344 + $0x24] sm:$0xf]
  %v355 = vld [vmem:[%s344 + $0x28] sm:$0xf]
  %v356 = vld [vmem:[%s344 + $0x2c] sm:$0xf]
  %v357 = vld [vmem:[%s344 + $0x30] sm:$0xf]
  %v358 = vld [vmem:[%s344 + $0x34] sm:$0xf]
  %v359 = vld [vmem:[%s344 + $0x38] sm:$0xf]
  %v360 = vld [vmem:[%s344 + $0x3c] sm:$0xf]
  %v361 = vunpack.c.l.b16 %v333
  %v362 = vunpack.c.l.b16 %v336
  %v363 = vunpack.c.l.b16 %v340
  %v364 = vunpack.c.l.b16 %v343
  %v365 = vpack.c.b16 %v362, %v361
  %v366 = vpack.c.b16 %v364, %v363
  %v385 = vunpack.c.l.b16 %v345
  %v386 = vunpack.c.l.b16 %v346
  %v387 = vunpack.c.l.b16 %v347
  %v388 = vunpack.c.l.b16 %v348
  %v389 = vunpack.c.l.b16 %v349
  %v390 = vunpack.c.l.b16 %v350
  %v391 = vunpack.c.l.b16 %v351
  %v392 = vunpack.c.l.b16 %v352
  %v393 = vunpack.c.l.b16 %v353
  %v394 = vunpack.c.l.b16 %v354
  %v395 = vunpack.c.l.b16 %v355
  %v396 = vunpack.c.l.b16 %v356
  %v397 = vunpack.c.l.b16 %v357
  %v398 = vunpack.c.l.b16 %v358
  %v399 = vunpack.c.l.b16 %v359
  %v400 = vunpack.c.l.b16 %v360
  %v401 = vpack.c.b16 %v386, %v385
  %v402 = vpack.c.b16 %v388, %v387
  %v403 = vpack.c.b16 %v390, %v389
  %v404 = vpack.c.b16 %v392, %v391
  %v405 = vpack.c.b16 %v394, %v393
  %v406 = vpack.c.b16 %v396, %v395
  %v407 = vpack.c.b16 %v398, %v397
  %v408 = vpack.c.b16 %v400, %v399
  %417 = vmatprep.subr.bf16.mxu0 0
  %418 = vmatpush1.bf16.msra.mxu0 %v401
  %419 = vmatprep.subr.bf16.mxu0 0
  %420 = vmatpush1.bf16.msra.mxu0 %v402
  %421 = vmatprep.subr.bf16.mxu0 0
  %422 = vmatpush1.bf16.msra.mxu0 %v403
  %423 = vmatprep.subr.bf16.mxu0 0
  %424 = vmatpush1.bf16.msra.mxu0 %v404
  %425 = vmatprep.subr.bf16.mxu0 0
  %426 = vmatpush1.bf16.msra.mxu0 %v405
  %427 = vmatprep.subr.bf16.mxu0 0
  %428 = vmatpush1.bf16.msra.mxu0 %v406
  %429 = vmatprep.subr.bf16.mxu0 0
  %430 = vmatpush1.bf16.msra.mxu0 %v407
  %431 = vmatprep.subr.bf16.mxu0 0
  %432 = vmatpush1.bf16.msra.mxu0 %v408
  %433 = vmatprep.subr.bf16.mxu0 0
  %434 = vmatpush1.bf16.msra.mxu0 0
  %435 = vmatprep.subr.bf16.mxu0 0
  %436 = vmatpush1.bf16.msra.mxu0 0
  %437 = vmatprep.subr.bf16.mxu0 0
  %438 = vmatpush1.bf16.msra.mxu0 0
  %439 = vmatprep.subr.bf16.mxu0 0
  %440 = vmatpush1.bf16.msra.mxu0 0
  %441 = vmatprep.subr.bf16.mxu0 0
  %442 = vmatpush1.bf16.msra.mxu0 0
  %443 = vmatprep.subr.bf16.mxu0 0
  %444 = vmatpush1.bf16.msra.mxu0 0
  %445 = vmatprep.subr.bf16.mxu0 0
  %446 = vmatpush1.bf16.msra.mxu0 0
  %447 = vmatprep.subr.bf16.mxu0 0
  %448 = vmatpush1.bf16.msra.mxu0 0
  %449 = vmatprep.mubr.bf16.mxu0 0
  %450 = vmatmul.mubr.bf16.gmra.mrb[0].mxu0 %v365
  %v451 = vpop.f32.mrb[0].mxu0
  %v452 = vadd.f32 0.0, %v451
  %v453 = vpop.f32.mrb[0].mxu0
  %v454 = vpop.f32.mrb[0].mxu0
  %v455 = vadd.f32 0.0, %v454
  %v456 = vpop.f32.mrb[0].mxu0
  %457 = vmatprep.mubr.bf16.mxu0 0
  %458 = vmatmul.mubr.bf16.gmra.mrb[0].mxu0 %v366
  %v459 = vpop.f32.mrb[0].mxu0
  %v460 = vadd.f32 0.0, %v459
  %v461 = vpop.f32.mrb[0].mxu0
  %v462 = vpop.f32.mrb[0].mxu0
  %v463 = vadd.f32 0.0, %v462
  %v464 = vpop.f32.mrb[0].mxu0
  %465 = vdwg.mxu0
  %v466 = vadd.f32 %v311, %v452
  %v467 = vadd.f32 %v314, %v455
  %v468 = vadd.f32 %v319, %v460
  %v469 = vadd.f32 %v322, %v463
  %s470 = smul.u32 0, 2
  %s471 = smul.u32 %s470, 16
  %s472 = scalar_lea.vmem [#allocation2], %s471
  %473 = vst [vmem:[%s472] sm:$0xff] %v466
  %474 = vst [vmem:[%s472 + $0x8] sm:$0xff] %v467
  %475 = vst [vmem:[%s472 + $0x10] sm:$0xff] %v468
  %476 = vst [vmem:[%s472 + $0x18] sm:$0xff] %v469
  %v477 = vadd.f32 %v466, %v467
  %v478 = vadd.f32 %v477, %v468
  %v479 = vadd.f32 %v478, %v469
  %v480 = vrot.slane %v479, 4
  %v481 = vadd.f32 %v479, %v480
  %v482 = vrot.slane %v481, 2
  %v483 = vadd.f32 %v481, %v482
  %v484 = vrot.slane %v483, 1
  %v485 = vadd.f32 %v483, %v484
  %v486 = vmul.f32 %v466, %v466
  %v487 = vmul.f32 %v467, %v467
  %v488 = vmul.f32 %v468, %v468
  %v489 = vmul.f32 %v469, %v469
  %v490 = vadd.f32 %v486, %v487
  %v491 = vadd.f32 %v490, %v488
  %v492 = vadd.f32 %v491, %v489
  %v493 = vrot.slane %v492, 4
  %v494 = vadd.f32 %v492, %v493
  %v495 = vrot.slane %v494, 2
  %v496 = vadd.f32 %v494, %v495
  %v497 = vrot.slane %v496, 1
  %v498 = vadd.f32 %v496, %v497
  %p499 = scmp.eq.s32.totalorder 0, 0
  // Predicated region
  $region22: #{_lambda_.3} parent=0 // pred_check
    %p500 = pneg %p499
  $region23: #{_lambda_.3} parent=0 // pred_check_branch
    %502 = sbr.rel (%p500) target = $region25
  $region24: #{_lambda_.3} parent=0 // pred_region
    %503 = vst [vmem:[#allocation3] sm:$0x1] %v485
    %504 = vst [vmem:[#allocation4] sm:$0x1] %v498
  $region25: #{_lambda_.3} parent=0 // pred_fallthru
    _
  %p505 = scmp.gt.s32.totalorder 0, 0
  // Predicated region
  $region26: #{_lambda_.3} parent=0 // pred_check
    %p506 = pneg %p505
  $region27: #{_lambda_.3} parent=0 // pred_check_branch
    %508 = sbr.rel (%p506) target = $region29
  $region28: #{_lambda_.3} parent=0 // pred_region
    %v509 = vld [vmem:[#allocation3] sm:$0x1]
    %v510 = vadd.f32 %v509, %v485
    %511 = vst [vmem:[#allocation3] sm:$0x1] %v510
    %v512 = vld [vmem:[#allocation4] sm:$0x1]
    %v513 = vadd.f32 %v512, %v498
    %514 = vst [vmem:[#allocation4] sm:$0x1] %v513
  $region29: #{_lambda_.3} parent=0 // pred_fallthru
    _
  // Predicated region
  $region30: #{_lambda_.3} parent=0 // pred_check
    %p515 = pneg %p499
  $region31: #{_lambda_.3} parent=0 // pred_check_branch
    %517 = sbr.rel (%p515) target = $region33
  $region32: #{_lambda_.3} parent=0 // pred_region
    %v518 = vld [vmem:[#allocation3] sm:$0x1]
    %v519 = vld [vmem:[%s2] sm:$0xff]
    %v520 = vld [vmem:[%s2 + $0x8] sm:$0xff]
    %v521 = vld [vmem:[%s2 + $0x10] sm:$0xff]
    %v522 = vld [vmem:[%s2 + $0x18] sm:$0xff]
    %v523 = vld [vmem:[%s2 + $0x20] sm:$0xff]
    %v524 = vld [vmem:[%s2 + $0x28] sm:$0xff]
    %v525 = vld [vmem:[%s2 + $0x30] sm:$0xff]
    %v526 = vld [vmem:[%s2 + $0x38] sm:$0xff]
    %v527 = vld [vmem:[%s2 + $0x40] sm:$0xff]
    %v528 = vld [vmem:[%s2 + $0x48] sm:$0xff]
    %v529 = vld [vmem:[%s2 + $0x50] sm:$0xff]
    %v530 = vld [vmem:[%s2 + $0x58] sm:$0xff]
    %v531 = vld [vmem:[%s2 + $0x60] sm:$0xff]
    %v532 = vld [vmem:[%s2 + $0x68] sm:$0xff]
    %v533 = vld [vmem:[%s2 + $0x70] sm:$0xff]
    %v534 = vld [vmem:[%s2 + $0x78] sm:$0xff]
    %535 = vmatprep.subr.mxu0 0.0
    %536 = vmatpush1.msra.mxu0 %v519
    %537 = vmatprep.subr.mxu0 0.0
    %538 = vmatpush1.msra.mxu0 %v520
    %539 = vmatprep.subr.mxu0 0.0
    %540 = vmatpush1.msra.mxu0 %v521
    %541 = vmatprep.subr.mxu0 0.0
    %542 = vmatpush1.msra.mxu0 %v522
    %543 = vmatprep.subr.mxu0 0.0
    %544 = vmatpush1.msra.mxu0 %v523
    %545 = vmatprep.subr.mxu0 0.0
    %546 = vmatpush1.msra.mxu0 %v524
    %547 = vmatprep.subr.mxu0 0.0
    %548 = vmatpush1.msra.mxu0 %v525
    %549 = vmatprep.subr.mxu0 0.0
    %550 = vmatpush1.msra.mxu0 %v526
    %551 = vmatprep.subr.mxu0 0.0
    %552 = vmatpush1.msra.mxu0 %v527
    %553 = vmatprep.subr.mxu0 0.0
    %554 = vmatpush1.msra.mxu0 %v528
    %555 = vmatprep.subr.mxu0 0.0
    %556 = vmatpush1.msra.mxu0 %v529
    %557 = vmatprep.subr.mxu0 0.0
    %558 = vmatpush1.msra.mxu0 %v530
    %559 = vmatprep.subr.mxu0 0.0
    %560 = vmatpush1.msra.mxu0 %v531
    %561 = vmatprep.subr.mxu0 0.0
    %562 = vmatpush1.msra.mxu0 %v532
    %563 = vmatprep.subr.mxu0 0.0
    %564 = vmatpush1.msra.mxu0 %v533
    %565 = vmatprep.subr.mxu0 0.0
    %566 = vmatpush1.msra.mxu0 %v534
    %567 = vmatprep.subr.mxu0 0.0
    %568 = vmatpush1.msra.mxu0 0.0
    %569 = vmatprep.subr.mxu0 0.0
    %570 = vmatpush1.msra.mxu0 0.0
    %571 = vmatprep.subr.mxu0 0.0
    %572 = vmatpush1.msra.mxu0 0.0
    %573 = vmatprep.subr.mxu0 0.0
    %574 = vmatpush1.msra.mxu0 0.0
    %575 = vmatprep.subr.mxu0 0.0
    %576 = vmatpush1.msra.mxu0 0.0
    %577 = vmatprep.subr.mxu0 0.0
    %578 = vmatpush1.msra.mxu0 0.0
    %579 = vmatprep.subr.mxu0 0.0
    %580 = vmatpush1.msra.mxu0 0.0
    %581 = vmatprep.subr.mxu0 0.0
    %582 = vmatpush1.msra.mxu0 0.0
    %583 = vmatprep.subr.mxu0 0.0
    %584 = vmatpush1.msra.mxu0 0.0
    %585 = vmatprep.subr.mxu0 0.0
    %586 = vmatpush1.msra.mxu0 0.0
    %587 = vmatprep.subr.mxu0 0.0
    %588 = vmatpush1.msra.mxu0 0.0
    %589 = vmatprep.subr.mxu0 0.0
    %590 = vmatpush1.msra.mxu0 0.0
    %591 = vmatprep.subr.mxu0 0.0
    %592 = vmatpush1.msra.mxu0 0.0
    %593 = vmatprep.subr.mxu0 0.0
    %594 = vmatpush1.msra.mxu0 0.0
    %595 = vmatprep.subr.mxu0 0.0
    %596 = vmatpush1.msra.mxu0 0.0
    %597 = vmatprep.subr.mxu0 0.0
    %598 = vmatpush1.msra.mxu0 0.0
    %599 = vmatprep.mubr.f32.mxu0 0.0
    %600 = vmatmul.mubr.f32.gmra.mrb[0].mxu0 %v518
    %v601 = vpop.f32.mrb[0].mxu0
    %v602 = vadd.f32 0.0, %v601
    %v603 = vpop.f32.mrb[0].mxu0
    %604 = vdwg.mxu0
    %v605 = vld [vmem:[#allocation4] sm:$0x1]
    %606 = vmatprep.subr.mxu0 0.0
    %607 = vmatpush1.msra.mxu0 %v519
    %608 = vmatprep.subr.mxu0 0.0
    %609 = vmatpush1.msra.mxu0 %v520
    %610 = vmatprep.subr.mxu0 0.0
    %611 = vmatpush1.msra.mxu0 %v521
    %612 = vmatprep.subr.mxu0 0.0
    %613 = vmatpush1.msra.mxu0 %v522
    %614 = vmatprep.subr.mxu0 0.0
    %615 = vmatpush1.msra.mxu0 %v523
    %616 = vmatprep.subr.mxu0 0.0
    %617 = vmatpush1.msra.mxu0 %v524
    %618 = vmatprep.subr.mxu0 0.0
    %619 = vmatpush1.msra.mxu0 %v525
    %620 = vmatprep.subr.mxu0 0.0
    %621 = vmatpush1.msra.mxu0 %v526
    %622 = vmatprep.subr.mxu0 0.0
    %623 = vmatpush1.msra.mxu0 %v527
    %624 = vmatprep.subr.mxu0 0.0
    %625 = vmatpush1.msra.mxu0 %v528
    %626 = vmatprep.subr.mxu0 0.0
    %627 = vmatpush1.msra.mxu0 %v529
    %628 = vmatprep.subr.mxu0 0.0
    %629 = vmatpush1.msra.mxu0 %v530
    %630 = vmatprep.subr.mxu0 0.0
    %631 = vmatpush1.msra.mxu0 %v531
    %632 = vmatprep.subr.mxu0 0.0
    %633 = vmatpush1.msra.mxu0 %v532
    %634 = vmatprep.subr.mxu0 0.0
    %635 = vmatpush1.msra.mxu0 %v533
    %636 = vmatprep.subr.mxu0 0.0
    %637 = vmatpush1.msra.mxu0 %v534
    %638 = vmatprep.subr.mxu0 0.0
    %639 = vmatpush1.msra.mxu0 0.0
    %640 = vmatprep.subr.mxu0 0.0
    %641 = vmatpush1.msra.mxu0 0.0
    %642 = vmatprep.subr.mxu0 0.0
    %643 = vmatpush1.msra.mxu0 0.0
    %644 = vmatprep.subr.mxu0 0.0
    %645 = vmatpush1.msra.mxu0 0.0
    %646 = vmatprep.subr.mxu0 0.0
    %647 = vmatpush1.msra.mxu0 0.0
    %648 = vmatprep.subr.mxu0 0.0
    %649 = vmatpush1.msra.mxu0 0.0
    %650 = vmatprep.subr.mxu0 0.0
    %651 = vmatpush1.msra.mxu0 0.0
    %652 = vmatprep.subr.mxu0 0.0
    %653 = vmatpush1.msra.mxu0 0.0
    %654 = vmatprep.subr.mxu0 0.0
    %655 = vmatpush1.msra.mxu0 0.0
    %656 = vmatprep.subr.mxu0 0.0
    %657 = vmatpush1.msra.mxu0 0.0
    %658 = vmatprep.subr.mxu0 0.0
    %659 = vmatpush1.msra.mxu0 0.0
    %660 = vmatprep.subr.mxu0 0.0
    %661 = vmatpush1.msra.mxu0 0.0
    %662 = vmatprep.subr.mxu0 0.0
    %663 = vmatpush1.msra.mxu0 0.0
    %664 = vmatprep.subr.mxu0 0.0
    %665 = vmatpush1.msra.mxu0 0.0
    %666 = vmatprep.subr.mxu0 0.0
    %667 = vmatpush1.msra.mxu0 0.0
    %668 = vmatprep.subr.mxu0 0.0
    %669 = vmatpush1.msra.mxu0 0.0
    %670 = vmatprep.mubr.f32.mxu0 0.0
    %671 = vmatmul.mubr.f32.gmra.mrb[0].mxu0 %v605
    %v672 = vpop.f32.mrb[0].mxu0
    %v673 = vadd.f32 0.0, %v672
    %v674 = vpop.f32.mrb[0].mxu0
    %675 = vdwg.mxu0
    %v676 = vmul.f32 %v602, 0.001953125
    %v677 = vmul.f32 %v673, 0.001953125
    %v678 = vmul.f32 %v676, %v676
    %v679 = vsub.f32 %v677, %v678
    %v680 = vadd.f32 %v679, 1e-05
    %v681 = vrsqrt.pop %v680
    %v682 = vld [vmem:[%s3] sm:$0x1]
    %v683 = vmul.f32 %v682, %v681
    %v684 = vld [vmem:[%s4] sm:$0x1]
    %v685 = vmul.f32 %v676, %v683
    %v686 = vsub.f32 %v684, %v685
    %v687 = vld [vmem:[#allocation2] sm:$0xff]
    %v688 = vld [vmem:[#allocation2 + $0x8] sm:$0xff]
    %v689 = vld [vmem:[#allocation2 + $0x10] sm:$0xff]
    %v690 = vld [vmem:[#allocation2 + $0x18] sm:$0xff]
    %v692 = vlaneseq
    %v693 = vshrl.u32 %v692, 7
    %v694 = vsub.s32 0, %v693
    %v695 = vrot.slane %v683, %v694
    %v697 = vmul.f32 %v687, %v695
    %v698 = vmul.f32 %v688, %v695
    %v699 = vmul.f32 %v689, %v695
    %v700 = vmul.f32 %v690, %v695
    %v702 = vlaneseq
    %v703 = vshrl.u32 %v702, 7
    %v704 = vsub.s32 0, %v703
    %v705 = vrot.slane %v686, %v704
    %v707 = vadd.f32 %v697, %v705
    %v708 = vadd.f32 %v698, %v705
    %v709 = vadd.f32 %v699, %v705
    %v710 = vadd.f32 %v700, %v705
    %v711 = vmax.f32 %v707, 0.0
    %v712 = vmax.f32 %v708, 0.0
    %v713 = vmax.f32 %v709, 0.0
    %v714 = vmax.f32 %v710, 0.0
    %v715 = vpack.c.bf16 %v712, %v711
    %v716 = vpack.c.bf16 %v714, %v713
    %v719 = vunpack.c.l.b16 %v715
    %v720 = vunpack.c.h.b16 %v715
    %v721 = vunpack.c.l.b16 %v716
    %v722 = vunpack.c.h.b16 %v716
    %v723 = vpack.c.b16 %v719, %v719
    %v724 = vpack.c.b16 %v720, %v720
    %v725 = vpack.c.b16 %v721, %v721
    %v726 = vpack.c.b16 %v722, %v722
    %731 = vst [vmem:[%s5] sm:$0xf] %v723
    %732 = vst [vmem:[%s5 + $0x4] sm:$0xf] %v724
    %733 = vst [vmem:[%s5 + $0x8] sm:$0xf] %v725
    %734 = vst [vmem:[%s5 + $0xc] sm:$0xf] %v726
  $region33: #{_lambda_.3} parent=0 // pred_fallthru
    _
  // Predicated region
  $region34: #{_lambda_.3} parent=0 // pred_check
    _
  $region35: #{_lambda_.3} parent=0 // pred_check_branch
    %736 = sbr.rel (0) target = $region37
  $region36: #{_lambda_.3} parent=0 // pred_region
    _
  $region37: #{_lambda_.3} parent=0 // pred_fallthru
    _
  // Predicated region
  $region38: #{_lambda_.3} parent=0 // pred_check
    _
  $region39: #{_lambda_.3} parent=0 // pred_check_branch
    %738 = sbr.rel (0) target = $region41
  $region40: #{_lambda_.3} parent=0 // pred_region
    _
  $region41: #{_lambda_.3} parent=0 // pred_fallthru
    _

</llo_original>
